<compile_context>
chip_gen: v6e
topology: v6e:2x2x1
jax: 0.10.0
libtpu: 0.0.40
codegen_flags: <defaults>
</compile_context>

<pallas_src>
import jax
import jax.numpy as jnp
from jax import lax
from jax.experimental import pallas as pl
from jax.experimental.pallas import tpu as pltpu

# ----------------------- synthetic config (small dims) -----------------------
EMBED_DIM = 32        # cfg ... WORD_EMBEDDING_FEATURES_DIM (orig 200/300)
GEO_DIM = 32          # geometry_feat_dim (orig 128)
HIDDEN_DIM = 64       # hidden_dim (orig 512)
NUM_OBJ_CLASSES = 8   # len(obj_classes)
NUM_REL_CLASSES = 16  # len(rel_classes) == out_dim
INPUT_DIM = 32        # self.input_dim (visual feature dim)
PAIR_FEAT_DIM = 2 * EMBED_DIM + 2 * GEO_DIM        # 128: input to box_feat_extract
FEAT_DIM = INPUT_DIM + PAIR_FEAT_DIM               # 160: fused kernel input width
OUT_DIM = NUM_REL_CLASSES + 1                      # cls logits + folded bin logit
OUT_PAD = 128                                      # lane-dense output slab
TP = 256              # pair-row tile for the Pallas grid
LN_EPS = 1e-5
MXU_DTYPE = jnp.bfloat16   # matmul operand dtype (accumulation stays f32)


# ------------------------------ Pallas kernel --------------------------------
def _rel_pair_kernel(
    feat_ref,
    w1_ref, b1_ref,
    ln1g_ref, ln1b_ref, wfuse_ref, bfuse_ref,
    ln2g_ref, ln2b_ref, wout_ref, bout_ref,
    out_ref,
):
    f32 = jnp.float32

    # vis_embed + proposal_box_feat_extract fused via a block-diagonal weight:
    #   x = ReLU([vis | pair]) @ [[w_vis 0] [0 w_geo]] + [b_vis | b_geo]
    # which equals concat([vis_embed(vis), box_feat_extract(pair)], axis=-1).
    x = jnp.maximum(feat_ref[...], 0.0)
    x = jnp.dot(x.astype(MXU_DTYPE), w1_ref[...],
                preferred_element_type=f32) + b1_ref[...]

    # proposal_feat_fusion = LayerNorm(2H) -> ReLU -> Linear(2H -> H)
    mu = jnp.mean(x, axis=-1, keepdims=True)
    var = jnp.mean((x - mu) * (x - mu), axis=-1, keepdims=True)
    x = (x - mu) * lax.rsqrt(var + LN_EPS) * ln1g_ref[...] + ln1b_ref[...]
    x = jnp.maximum(x, 0.0)
    h = jnp.dot(x.astype(MXU_DTYPE), wfuse_ref[...],
                preferred_element_type=f32) + bfuse_ref[...]

    # proposal_relness_cls_fc = LayerNorm(H) -> ReLU -> Linear(H -> R), with
    # fusion_layer (R -> 1) folded into the same matmul: column R of the output
    # is the bin logit, columns R+1..127 are zero padding (lane-dense store).
    mu2 = jnp.mean(h, axis=-1, keepdims=True)
    var2 = jnp.mean((h - mu2) * (h - mu2), axis=-1, keepdims=True)
    h2 = (h - mu2) * lax.rsqrt(var2 + LN_EPS) * ln2g_ref[...] + ln2b_ref[...]
    h2 = jnp.maximum(h2, 0.0)
    out = jnp.dot(h2.astype(MXU_DTYPE), wout_ref[...],
                  preferred_element_type=f32) + bout_ref[...]

    out_ref[...] = out.astype(out_ref.dtype)


# ----------------------- host-side weight preparation ------------------------
def _prep_kernel_weights(params):
    """Fold module weights into kernel operands:
       - block-diagonal first matmul (vis_embed ⊕ box_feat_extract)
       - fusion_layer folded into the cls head, zero-padded to OUT_PAD lanes
       - matmul weights cast to MXU_DTYPE; biases / LN params stay f32."""
    H = HIDDEN_DIM
    w1 = jnp.zeros((FEAT_DIM, 2 * H), jnp.float32)
    w1 = w1.at[:INPUT_DIM, :H].set(params["w_vis"])
    w1 = w1.at[INPUT_DIM:, H:].set(params["w_geo"])
    b1 = jnp.concatenate([params["b_vis"], params["b_geo"]], axis=-1)   # (1, 2H)

    w_cls, b_cls = params["w_cls"], params["b_cls"]
    w_bin, b_bin = params["w_bin"], params["b_bin"]
    w_out = jnp.concatenate([w_cls, w_cls @ w_bin], axis=1)             # (H, R+1)
    b_out = jnp.concatenate([b_cls, b_cls @ w_bin + b_bin], axis=1)     # (1, R+1)
    w_out = jnp.pad(w_out, ((0, 0), (0, OUT_PAD - OUT_DIM)))
    b_out = jnp.pad(b_out, ((0, 0), (0, OUT_PAD - OUT_DIM)))

    return (
        w1.astype(MXU_DTYPE), b1,
        params["ln1_g"], params["ln1_b"],
        params["w_fuse"].astype(MXU_DTYPE), params["b_fuse"],
        params["ln2_g"], params["ln2_b"],
        w_out.astype(MXU_DTYPE), b_out,
    )


def rel_pair_pallas(feat, weight_args):
    """feat: (P, FEAT_DIM) = [vis | pair-symbolic]. Returns (P, OUT_DIM)
    where [:, :R] are relness class logits and [:, R] is the bin logit."""
    P = feat.shape[0]
    Pp = max(TP, ((P + TP - 1) // TP) * TP)
    if Pp != P:
        feat = jnp.pad(feat, ((0, Pp - P), (0, 0)))

    rows = lambda i: (i, 0)      # pair-row tiles
    full = lambda i: (0, 0)      # weights: same full block every grid step
    weight_specs = [pl.BlockSpec(w.shape, full) for w in weight_args]

    out = pl.pallas_call(
        _rel_pair_kernel,
        out_shape=jax.ShapeDtypeStruct((Pp, OUT_PAD), jnp.float32),
        grid_spec=pltpu.PrefetchScalarGridSpec(
            num_scalar_prefetch=0,
            grid=(Pp // TP,),
            in_specs=[pl.BlockSpec((TP, FEAT_DIM), rows)] + weight_specs,
            out_specs=pl.BlockSpec((TP, OUT_PAD), rows),
        ),
        compiler_params=pltpu.CompilerParams(
            dimension_semantics=("parallel",)),
    )(feat, *weight_args)

    return out[:P, :OUT_DIM]


# ------------------------------- JAX glue ------------------------------------
def encode_box_info(bbox, size):
    """bbox: (N, 4) xyxy, size: (img_w, img_h). Returns (N, 9) as in SGG codebase."""
    wid, hei = float(size[0]), float(size[1])
    x1, y1, x2, y2 = bbox[:, 0:1], bbox[:, 1:2], bbox[:, 2:3], bbox[:, 3:4]
    w = x2 - x1 + 1.0
    h = y2 - y1 + 1.0
    x = x1 + 0.5 * w
    y = y1 + 0.5 * h
    info = jnp.concatenate(
        [w / wid, h / hei, x / wid, y / hei,
         x1 / wid, y1 / hei, x2 / wid, y2 / hei,
         w * h / (wid * hei)], axis=-1)
    return info.astype(jnp.float32)


def obj_pos_embed(params, box_info):
    # nn.Sequential(Linear(9, GEO), ReLU, Linear(GEO, GEO)) -- tiny, stays in glue
    h = box_info @ params["w_pos1"] + params["b_pos1"]
    h = jnp.maximum(h, 0.0)
    return h @ params["w_pos2"] + params["b_pos2"]


def rel_aware_rel_feature_forward(params, visual_feats, proposals, rel_pair_inds):
    """Mirror of RelAwareRelFeature.forward (hybrid predictor, visual feats on).

    visual_feats : list of (P_i, INPUT_DIM) per-pair visual features
    proposals    : list of dicts {bbox (N_i,4), size (2,), pred_score_dist (N_i, C)}
    rel_pair_inds: list of (P_i, 2) int32 subject/object indices
    Returns (relness_logits (sum P_i, R+1), [pred_rel_matrix (N_i, N_i), ...])
    """
    # Per-entity glue in JAX, then one fused pallas_call over ALL pair rows.
    pair_feats = []
    for prop, pair_idx in zip(proposals, rel_pair_inds):
        bbox = prop["bbox"]
        pred_score_dist = prop["pred_score_dist"]
        pos_embed = obj_pos_embed(params, encode_box_info(bbox, prop["size"]))
        obj_sem = pred_score_dist @ params["obj_sem_embed"]        # (N, EMBED)
        s, o = pair_idx[:, 0], pair_idx[:, 1]
        pair_feats.append(jnp.concatenate(
            [pos_embed[s], pos_embed[o], obj_sem[s], obj_sem[o]], axis=1))

    vis_all = jnp.concatenate(visual_feats, axis=0)
    pair_all = jnp.concatenate(pair_feats, axis=0)
    feat_all = jnp.concatenate([vis_all, pair_all], axis=1)        # (sum P_i, 160)

    out_all = rel_pair_pallas(feat_all, _prep_kernel_weights(params))
    # out_all == torch.cat(relness_logits_batch): [:, :R] cls logits, [:, R] bin

    relness_matrix = []
    off = 0
    for prop, pair_idx in zip(proposals, rel_pair_inds):
        N = prop["bbox"].shape[0]
        P = pair_idx.shape[0]
        bin_logits = out_all[off:off + P, NUM_REL_CLASSES]
        relness_scores = jax.nn.sigmoid(bin_logits)
        s, o = pair_idx[:, 0], pair_idx[:, 1]
        m = jnp.zeros((N, N), dtype=prop["pred_score_dist"].dtype)
        relness_matrix.append(m.at[s, o].set(relness_scores))
        off += P

    return out_all, relness_matrix


# ---------------------------- parameter creation ------------------------------
def init_params(key):
    ks = jax.random.split(key, 16)
    n = lambda k, shape, scale=0.02: (scale * jax.random.normal(k, shape)).astype(jnp.float32)
    H, E, G, R = HIDDEN_DIM, EMBED_DIM, GEO_DIM, NUM_REL_CLASSES
    return {
        # obj_sem_embed.weight (synthetic stand-in for GloVe vectors)
        "obj_sem_embed": n(ks[0], (NUM_OBJ_CLASSES, E), 1.0),
        # obj_pos_embed
        "w_pos1": n(ks[1], (9, G)), "b_pos1": jnp.zeros((G,), jnp.float32),
        "w_pos2": n(ks[2], (G, G)), "b_pos2": jnp.zeros((G,), jnp.float32),
        # vis_embed (ReLU, Linear(input_dim -> H))
        "w_vis": n(ks[3], (INPUT_DIM, H)), "b_vis": jnp.zeros((1, H), jnp.float32),
        # proposal_box_feat_extract (ReLU, Linear(2E+2G -> H))
        "w_geo": n(ks[4], (PAIR_FEAT_DIM, H)), "b_geo": jnp.zeros((1, H), jnp.float32),
        # proposal_feat_fusion (LayerNorm(2H), ReLU, Linear(2H -> H))
        "ln1_g": jnp.ones((1, 2 * H), jnp.float32),
        "ln1_b": jnp.zeros((1, 2 * H), jnp.float32),
        "w_fuse": n(ks[5], (2 * H, H)), "b_fuse": jnp.zeros((1, H), jnp.float32),
        # proposal_relness_cls_fc (LayerNorm(H), ReLU, Linear(H -> R))
        "ln2_g": jnp.ones((1, H), jnp.float32),
        "ln2_b": jnp.zeros((1, H), jnp.float32),
        "w_cls": n(ks[6], (H, R)), "b_cls": jnp.zeros((1, R), jnp.float32),
        # fusion_layer (Linear(R -> 1))  -- hybrid only, folded into w_cls at call time
        "w_bin": n(ks[7], (R, 1)), "b_bin": jnp.zeros((1, 1), jnp.float32),
    }


# ----------------------------------- main -------------------------------------
if __name__ == "__main__":
    key = jax.random.PRNGKey(0)
    k_par, k_d = jax.random.split(key)
    params = init_params(k_par)

    num_images = 2
    num_props = [5, 6]
    num_pairs = [8, 8]
    img_size = (64.0, 48.0)  # (width, height)

    proposals, rel_pair_inds, visual_feats = [], [], []
    for i in range(num_images):
        kk = jax.random.split(jax.random.fold_in(k_d, i), 5)
        N, P = num_props[i], num_pairs[i]
        xy1 = jax.random.uniform(kk[0], (N, 2)) * jnp.array([img_size[0] * 0.5,
                                                             img_size[1] * 0.5])
        wh = 2.0 + jax.random.uniform(kk[1], (N, 2)) * jnp.array([img_size[0] * 0.4,
                                                                  img_size[1] * 0.4])
        bbox = jnp.concatenate([xy1, xy1 + wh], axis=1).astype(jnp.float32)
        score_dist = jax.nn.softmax(jax.random.normal(kk[2], (N, NUM_OBJ_CLASSES)), axis=-1)
        proposals.append({"bbox": bbox, "size": img_size,
                          "pred_score_dist": score_dist.astype(jnp.float32)})
        rel_pair_inds.append(jax.random.randint(kk[3], (P, 2), 0, N, dtype=jnp.int32))
        visual_feats.append(jax.random.normal(kk[4], (P, INPUT_DIM), jnp.float32))

    relness_logits, relness_matrix = rel_aware_rel_feature_forward(
        params, visual_feats, proposals, rel_pair_inds)

    jax.block_until_ready(relness_logits)
    for m in relness_matrix:
        jax.block_until_ready(m)

    assert relness_logits.shape == (sum(num_pairs), NUM_REL_CLASSES + 1)
    assert relness_matrix[0].shape == (num_props[0], num_props[0])
    assert relness_matrix[1].shape == (num_props[1], num_props[1])
    assert bool(jnp.all(jnp.isfinite(relness_logits)))
    print("KERNEL_OK")
</pallas_src>

<mosaic_0001>
module attributes {stable_mosaic.version = 11 : i64} {
  func.func @_rel_pair_kernel(%arg0: i32, %arg1: memref<256x160xf32, #tpu.memory_space<vmem>>, %arg2: memref<160x128xbf16, #tpu.memory_space<vmem>>, %arg3: memref<1x128xf32, #tpu.memory_space<vmem>>, %arg4: memref<1x128xf32, #tpu.memory_space<vmem>>, %arg5: memref<1x128xf32, #tpu.memory_space<vmem>>, %arg6: memref<128x64xbf16, #tpu.memory_space<vmem>>, %arg7: memref<1x64xf32, #tpu.memory_space<vmem>>, %arg8: memref<1x64xf32, #tpu.memory_space<vmem>>, %arg9: memref<1x64xf32, #tpu.memory_space<vmem>>, %arg10: memref<64x128xbf16, #tpu.memory_space<vmem>>, %arg11: memref<1x128xf32, #tpu.memory_space<vmem>>, %arg12: memref<256x128xf32, #tpu.memory_space<vmem>>) attributes {dimension_semantics = [#tpu.dimension_semantics<parallel>], iteration_bounds = array<i64: 1>, scalar_prefetch = 0 : i64, scratch_operands = 0 : i64, tpu.core_type = #tpu.core_type<tc>, window_params = [{transform_indices = @transform_0, window_bounds = array<i64: 256, 160>}, {pipeline_mode = #tpu.pipeline_mode<synchronous>, transform_indices = @transform_1, window_bounds = array<i64: 160, 128>}, {pipeline_mode = #tpu.pipeline_mode<synchronous>, transform_indices = @transform_2, window_bounds = array<i64: 1, 128>}, {pipeline_mode = #tpu.pipeline_mode<synchronous>, transform_indices = @transform_3, window_bounds = array<i64: 1, 128>}, {pipeline_mode = #tpu.pipeline_mode<synchronous>, transform_indices = @transform_4, window_bounds = array<i64: 1, 128>}, {pipeline_mode = #tpu.pipeline_mode<synchronous>, transform_indices = @transform_5, window_bounds = array<i64: 128, 64>}, {pipeline_mode = #tpu.pipeline_mode<synchronous>, transform_indices = @transform_6, window_bounds = array<i64: 1, 64>}, {pipeline_mode = #tpu.pipeline_mode<synchronous>, transform_indices = @transform_7, window_bounds = array<i64: 1, 64>}, {pipeline_mode = #tpu.pipeline_mode<synchronous>, transform_indices = @transform_8, window_bounds = array<i64: 1, 64>}, {pipeline_mode = #tpu.pipeline_mode<synchronous>, transform_indices = @transform_9, window_bounds = array<i64: 64, 128>}, {pipeline_mode = #tpu.pipeline_mode<synchronous>, transform_indices = @transform_10, window_bounds = array<i64: 1, 128>}, {transform_indices = @transform_11, window_bounds = array<i64: 256, 128>}]} {
    %c0 = arith.constant 0 : index
    %c0_0 = arith.constant 0 : index
    %0 = vector.load %arg1[%c0, %c0_0] : memref<256x160xf32, #tpu.memory_space<vmem>>, vector<256x160xf32>
    %cst = arith.constant 0.000000e+00 : f32
    %1 = vector.broadcast %cst : f32 to vector<256x160xf32>
    %2 = arith.maximumf %0, %1 : vector<256x160xf32>
    %3 = arith.truncf %2 : vector<256x160xf32> to vector<256x160xbf16>
    %c0_1 = arith.constant 0 : index
    %c0_2 = arith.constant 0 : index
    %4 = vector.load %arg2[%c0_1, %c0_2] : memref<160x128xbf16, #tpu.memory_space<vmem>>, vector<160x128xbf16>
    %cst_3 = arith.constant dense<0.000000e+00> : vector<256x128xf32>
    %5 = tpu.matmul %3, %4, %cst_3 {dimension_numbers = #tpu.dot_dimension_numbers<[1], [0], [0], [1], [0, 0, 1, 1], [], []>} : vector<256x160xbf16>, vector<160x128xbf16>, vector<256x128xf32> -> vector<256x128xf32>
    %c0_4 = arith.constant 0 : index
    %c0_5 = arith.constant 0 : index
    %6 = vector.load %arg3[%c0_4, %c0_5] : memref<1x128xf32, #tpu.memory_space<vmem>>, vector<1x128xf32>
    %7 = vector.broadcast %6 : vector<1x128xf32> to vector<256x128xf32>
    %8 = arith.addf %5, %7 : vector<256x128xf32>
    %cst_6 = arith.constant dense<0.000000e+00> : vector<256xf32>
    %9 = vector.multi_reduction <add>, %8, %cst_6 [1] : vector<256x128xf32> to vector<256xf32>
    %10 = vector.shape_cast %9 : vector<256xf32> to vector<256x1xf32>
    %cst_7 = arith.constant 1.280000e+02 : f32
    %11 = vector.broadcast %cst_7 : f32 to vector<256x1xf32>
    %12 = arith.divf %10, %11 : vector<256x1xf32>
    %13 = vector.broadcast %12 : vector<256x1xf32> to vector<256x128xf32>
    %14 = arith.subf %8, %13 : vector<256x128xf32>
    %15 = vector.broadcast %12 : vector<256x1xf32> to vector<256x128xf32>
    %16 = arith.subf %8, %15 : vector<256x128xf32>
    %17 = arith.mulf %14, %16 : vector<256x128xf32>
    %cst_8 = arith.constant dense<0.000000e+00> : vector<256xf32>
    %18 = vector.multi_reduction <add>, %17, %cst_8 [1] : vector<256x128xf32> to vector<256xf32>
    %19 = vector.shape_cast %18 : vector<256xf32> to vector<256x1xf32>
    %cst_9 = arith.constant 1.280000e+02 : f32
    %20 = vector.broadcast %cst_9 : f32 to vector<256x1xf32>
    %21 = arith.divf %19, %20 : vector<256x1xf32>
    %22 = vector.broadcast %12 : vector<256x1xf32> to vector<256x128xf32>
    %23 = arith.subf %8, %22 : vector<256x128xf32>
    %cst_10 = arith.constant 9.99999974E-6 : f32
    %24 = vector.broadcast %cst_10 : f32 to vector<256x1xf32>
    %25 = arith.addf %21, %24 : vector<256x1xf32>
    %26 = math.rsqrt %25 : vector<256x1xf32>
    %27 = vector.broadcast %26 : vector<256x1xf32> to vector<256x128xf32>
    %28 = arith.mulf %23, %27 : vector<256x128xf32>
    %c0_11 = arith.constant 0 : index
    %c0_12 = arith.constant 0 : index
    %29 = vector.load %arg4[%c0_11, %c0_12] : memref<1x128xf32, #tpu.memory_space<vmem>>, vector<1x128xf32>
    %30 = vector.broadcast %29 : vector<1x128xf32> to vector<256x128xf32>
    %31 = arith.mulf %28, %30 : vector<256x128xf32>
    %c0_13 = arith.constant 0 : index
    %c0_14 = arith.constant 0 : index
    %32 = vector.load %arg5[%c0_13, %c0_14] : memref<1x128xf32, #tpu.memory_space<vmem>>, vector<1x128xf32>
    %33 = vector.broadcast %32 : vector<1x128xf32> to vector<256x128xf32>
    %34 = arith.addf %31, %33 : vector<256x128xf32>
    %cst_15 = arith.constant 0.000000e+00 : f32
    %35 = vector.broadcast %cst_15 : f32 to vector<256x128xf32>
    %36 = arith.maximumf %34, %35 : vector<256x128xf32>
    %37 = arith.truncf %36 : vector<256x128xf32> to vector<256x128xbf16>
    %c0_16 = arith.constant 0 : index
    %c0_17 = arith.constant 0 : index
    %38 = vector.load %arg6[%c0_16, %c0_17] : memref<128x64xbf16, #tpu.memory_space<vmem>>, vector<128x64xbf16>
    %cst_18 = arith.constant dense<0.000000e+00> : vector<256x64xf32>
    %39 = tpu.matmul %37, %38, %cst_18 {dimension_numbers = #tpu.dot_dimension_numbers<[1], [0], [0], [1], [0, 0, 1, 1], [], []>} : vector<256x128xbf16>, vector<128x64xbf16>, vector<256x64xf32> -> vector<256x64xf32>
    %c0_19 = arith.constant 0 : index
    %c0_20 = arith.constant 0 : index
    %40 = vector.load %arg7[%c0_19, %c0_20] : memref<1x64xf32, #tpu.memory_space<vmem>>, vector<1x64xf32>
    %41 = vector.broadcast %40 : vector<1x64xf32> to vector<256x64xf32>
    %42 = arith.addf %39, %41 : vector<256x64xf32>
    %cst_21 = arith.constant dense<0.000000e+00> : vector<256xf32>
    %43 = vector.multi_reduction <add>, %42, %cst_21 [1] : vector<256x64xf32> to vector<256xf32>
    %44 = vector.shape_cast %43 : vector<256xf32> to vector<256x1xf32>
    %cst_22 = arith.constant 6.400000e+01 : f32
    %45 = vector.broadcast %cst_22 : f32 to vector<256x1xf32>
    %46 = arith.divf %44, %45 : vector<256x1xf32>
    %47 = vector.broadcast %46 : vector<256x1xf32> to vector<256x64xf32>
    %48 = arith.subf %42, %47 : vector<256x64xf32>
    %49 = vector.broadcast %46 : vector<256x1xf32> to vector<256x64xf32>
    %50 = arith.subf %42, %49 : vector<256x64xf32>
    %51 = arith.mulf %48, %50 : vector<256x64xf32>
    %cst_23 = arith.constant dense<0.000000e+00> : vector<256xf32>
    %52 = vector.multi_reduction <add>, %51, %cst_23 [1] : vector<256x64xf32> to vector<256xf32>
    %53 = vector.shape_cast %52 : vector<256xf32> to vector<256x1xf32>
    %cst_24 = arith.constant 6.400000e+01 : f32
    %54 = vector.broadcast %cst_24 : f32 to vector<256x1xf32>
    %55 = arith.divf %53, %54 : vector<256x1xf32>
    %56 = vector.broadcast %46 : vector<256x1xf32> to vector<256x64xf32>
    %57 = arith.subf %42, %56 : vector<256x64xf32>
    %cst_25 = arith.constant 9.99999974E-6 : f32
    %58 = vector.broadcast %cst_25 : f32 to vector<256x1xf32>
    %59 = arith.addf %55, %58 : vector<256x1xf32>
    %60 = math.rsqrt %59 : vector<256x1xf32>
    %61 = vector.broadcast %60 : vector<256x1xf32> to vector<256x64xf32>
    %62 = arith.mulf %57, %61 : vector<256x64xf32>
    %c0_26 = arith.constant 0 : index
    %c0_27 = arith.constant 0 : index
    %63 = vector.load %arg8[%c0_26, %c0_27] : memref<1x64xf32, #tpu.memory_space<vmem>>, vector<1x64xf32>
    %64 = vector.broadcast %63 : vector<1x64xf32> to vector<256x64xf32>
    %65 = arith.mulf %62, %64 : vector<256x64xf32>
    %c0_28 = arith.constant 0 : index
    %c0_29 = arith.constant 0 : index
    %66 = vector.load %arg9[%c0_28, %c0_29] : memref<1x64xf32, #tpu.memory_space<vmem>>, vector<1x64xf32>
    %67 = vector.broadcast %66 : vector<1x64xf32> to vector<256x64xf32>
    %68 = arith.addf %65, %67 : vector<256x64xf32>
    %cst_30 = arith.constant 0.000000e+00 : f32
    %69 = vector.broadcast %cst_30 : f32 to vector<256x64xf32>
    %70 = arith.maximumf %68, %69 : vector<256x64xf32>
    %71 = arith.truncf %70 : vector<256x64xf32> to vector<256x64xbf16>
    %c0_31 = arith.constant 0 : index
    %c0_32 = arith.constant 0 : index
    %72 = vector.load %arg10[%c0_31, %c0_32] : memref<64x128xbf16, #tpu.memory_space<vmem>>, vector<64x128xbf16>
    %cst_33 = arith.constant dense<0.000000e+00> : vector<256x128xf32>
    %73 = tpu.matmul %71, %72, %cst_33 {dimension_numbers = #tpu.dot_dimension_numbers<[1], [0], [0], [1], [0, 0, 1, 1], [], []>} : vector<256x64xbf16>, vector<64x128xbf16>, vector<256x128xf32> -> vector<256x128xf32>
    %c0_34 = arith.constant 0 : index
    %c0_35 = arith.constant 0 : index
    %74 = vector.load %arg11[%c0_34, %c0_35] : memref<1x128xf32, #tpu.memory_space<vmem>>, vector<1x128xf32>
    %75 = vector.broadcast %74 : vector<1x128xf32> to vector<256x128xf32>
    %76 = arith.addf %73, %75 : vector<256x128xf32>
    %c0_36 = arith.constant 0 : index
    %c0_37 = arith.constant 0 : index
    %77 = vector.load %arg12[%c0_36, %c0_37] : memref<256x128xf32, #tpu.memory_space<vmem>>, vector<256x128xf32>
    tpu.vector_store %arg12[%c0_36, %c0_37], %76 {strides = array<i32>} : memref<256x128xf32, #tpu.memory_space<vmem>>, vector<256x128xf32>,
    return
  }
  func.func @transform_0(%arg0: i32) -> (i32, i32) {
    %c0_i32 = arith.constant 0 : i32
    %c0_i32_0 = arith.constant 0 : i32
    return %arg0, %c0_i32 : i32, i32
  }
  func.func @transform_1(%arg0: i32) -> (i32, i32) {
    %c0_i32 = arith.constant 0 : i32
    %c0_i32_0 = arith.constant 0 : i32
    %c0_i32_1 = arith.constant 0 : i32
    return %c0_i32, %c0_i32_0 : i32, i32
  }
  func.func @transform_2(%arg0: i32) -> (i32, i32) {
    %c0_i32 = arith.constant 0 : i32
    %c0_i32_0 = arith.constant 0 : i32
    %c0_i32_1 = arith.constant 0 : i32
    return %c0_i32, %c0_i32_0 : i32, i32
  }
  func.func @transform_3(%arg0: i32) -> (i32, i32) {
    %c0_i32 = arith.constant 0 : i32
    %c0_i32_0 = arith.constant 0 : i32
    %c0_i32_1 = arith.constant 0 : i32
    return %c0_i32, %c0_i32_0 : i32, i32
  }
  func.func @transform_4(%arg0: i32) -> (i32, i32) {
    %c0_i32 = arith.constant 0 : i32
    %c0_i32_0 = arith.constant 0 : i32
    %c0_i32_1 = arith.constant 0 : i32
    return %c0_i32, %c0_i32_0 : i32, i32
  }
  func.func @transform_5(%arg0: i32) -> (i32, i32) {
    %c0_i32 = arith.constant 0 : i32
    %c0_i32_0 = arith.constant 0 : i32
    %c0_i32_1 = arith.constant 0 : i32
    return %c0_i32, %c0_i32_0 : i32, i32
  }
  func.func @transform_6(%arg0: i32) -> (i32, i32) {
    %c0_i32 = arith.constant 0 : i32
    %c0_i32_0 = arith.constant 0 : i32
    %c0_i32_1 = arith.constant 0 : i32
    return %c0_i32, %c0_i32_0 : i32, i32
  }
  func.func @transform_7(%arg0: i32) -> (i32, i32) {
    %c0_i32 = arith.constant 0 : i32
    %c0_i32_0 = arith.constant 0 : i32
    %c0_i32_1 = arith.constant 0 : i32
    return %c0_i32, %c0_i32_0 : i32, i32
  }
  func.func @transform_8(%arg0: i32) -> (i32, i32) {
    %c0_i32 = arith.constant 0 : i32
    %c0_i32_0 = arith.constant 0 : i32
    %c0_i32_1 = arith.constant 0 : i32
    return %c0_i32, %c0_i32_0 : i32, i32
  }
  func.func @transform_9(%arg0: i32) -> (i32, i32) {
    %c0_i32 = arith.constant 0 : i32
    %c0_i32_0 = arith.constant 0 : i32
    %c0_i32_1 = arith.constant 0 : i32
    return %c0_i32, %c0_i32_0 : i32, i32
  }
  func.func @transform_10(%arg0: i32) -> (i32, i32) {
    %c0_i32 = arith.constant 0 : i32
    %c0_i32_0 = arith.constant 0 : i32
    %c0_i32_1 = arith.constant 0 : i32
    return %c0_i32, %c0_i32_0 : i32, i32
  }
  func.func @transform_11(%arg0: i32) -> (i32, i32) {
    %c0_i32 = arith.constant 0 : i32
    %c0_i32_0 = arith.constant 0 : i32
    return %arg0, %c0_i32 : i32, i32
  }
}

</mosaic_0001>

<llo_original>
// kernel: tpu_custom_call.1
$region0: #{tpu_custom_call.1}
  #allocation0 [shape = 'u32[]', space=smem, size = 0x4, offset = 0x4, fixed_abs, tag = 'smem constant byte address 0x4 - core index']
  #allocation1 [shape = 'u32[144,128]{1,0:T(1,128)}', space=vmem, size = 0x12000, scoped, tag = 'internal scratch']
  %s0 = inlined_call_operand.vmem [shape: f32[256,160], index: 0, kind: input, shape index: {}]
  %s1 = inlined_call_operand.vmem [shape: bf16[160,128], index: 1, kind: input, shape index: {}]
  %s2 = inlined_call_operand.vmem [shape: f32[1,128], index: 2, kind: input, shape index: {}]
  %s3 = inlined_call_operand.vmem [shape: f32[1,128], index: 3, kind: input, shape index: {}]
  %s4 = inlined_call_operand.vmem [shape: f32[1,128], index: 4, kind: input, shape index: {}]
  %s5 = inlined_call_operand.vmem [shape: bf16[128,64], index: 5, kind: input, shape index: {}]
  %s6 = inlined_call_operand.vmem [shape: f32[1,64], index: 6, kind: input, shape index: {}]
  %s7 = inlined_call_operand.vmem [shape: f32[1,64], index: 7, kind: input, shape index: {}]
  %s8 = inlined_call_operand.vmem [shape: f32[1,64], index: 8, kind: input, shape index: {}]
  %s9 = inlined_call_operand.vmem [shape: bf16[64,128], index: 9, kind: input, shape index: {}]
  %s10 = inlined_call_operand.vmem [shape: f32[1,128], index: 10, kind: input, shape index: {}]
  %s11 = inlined_call_operand.hbm [shape: f32[256,128], index: 11, kind: output, shape index: {}]
  %s12 = sld [smem:[#allocation0]]
  $region54: #{tpu_custom_call.1} parent=0
    _
  %s14 = ssub.s32 1, %s12
  %s15 = scalar_select 0, %s14, %s12
  $region1: #{tpu_custom_call.1} parent=0
    #allocation2 [shape = 'u8[131072]{0}', space=vmem, size = 0x20000, scoped, tag = 'output window, operand 0, single buffered']
    #allocation3 [shape = 's32[1]{0}', space=sflag, size = 0x4, scoped, tag = 'scoped memory for tpu_custom_call.1']
    %16 = vsyncpa [#allocation3], 0
    // Predicated region
    $region2: #{tpu_custom_call.1} parent=1 // pred_check
      _
    $region3: #{tpu_custom_call.1} parent=1 // pred_check_branch
      %18 = sbr.rel (0) target = $region5
    $region4: #{tpu_custom_call.1} parent=1 // pred_region
      _
    $region5: #{tpu_custom_call.1} parent=1 // pred_fallthru
      _
    // Predicated region
    $region6: #{tpu_custom_call.1} parent=1 // pred_check
      _
    $region7: #{tpu_custom_call.1} parent=1 // pred_check_branch
      %20 = sbr.rel (0) target = $region9
    $region8: #{tpu_custom_call.1} parent=1 // pred_region
      _
    $region9: #{tpu_custom_call.1} parent=1 // pred_fallthru
      _
    // Predicated region
    $region10: #{tpu_custom_call.1} parent=1 // pred_check
      _
    $region11: #{tpu_custom_call.1} parent=1 // pred_check_branch
      %22 = sbr.rel (0) target = $region13
    $region12: #{tpu_custom_call.1} parent=1 // pred_region
      _
    $region13: #{tpu_custom_call.1} parent=1 // pred_fallthru
      _
    // Predicated region
    $region14: #{tpu_custom_call.1} parent=1 // pred_check
      _
    $region15: #{tpu_custom_call.1} parent=1 // pred_check_branch
      %24 = sbr.rel (0) target = $region17
    $region16: #{tpu_custom_call.1} parent=1 // pred_region
      _
    $region17: #{tpu_custom_call.1} parent=1 // pred_fallthru
      _
    // Predicated region
    $region18: #{tpu_custom_call.1} parent=1 // pred_check
      _
    $region19: #{tpu_custom_call.1} parent=1 // pred_check_branch
      %26 = sbr.rel (0) target = $region21
    $region20: #{tpu_custom_call.1} parent=1 // pred_region
      _
    $region21: #{tpu_custom_call.1} parent=1 // pred_fallthru
      _
    // Predicated region
    $region22: #{tpu_custom_call.1} parent=1 // pred_check
      _
    $region23: #{tpu_custom_call.1} parent=1 // pred_check_branch
      %28 = sbr.rel (0) target = $region25
    $region24: #{tpu_custom_call.1} parent=1 // pred_region
      _
    $region25: #{tpu_custom_call.1} parent=1 // pred_fallthru
      _
    // Predicated region
    $region26: #{tpu_custom_call.1} parent=1 // pred_check
      _
    $region27: #{tpu_custom_call.1} parent=1 // pred_check_branch
      %30 = sbr.rel (0) target = $region29
    $region28: #{tpu_custom_call.1} parent=1 // pred_region
      _
    $region29: #{tpu_custom_call.1} parent=1 // pred_fallthru
      _
    // Predicated region
    $region30: #{tpu_custom_call.1} parent=1 // pred_check
      _
    $region31: #{tpu_custom_call.1} parent=1 // pred_check_branch
      %32 = sbr.rel (0) target = $region33
    $region32: #{tpu_custom_call.1} parent=1 // pred_region
      _
    $region33: #{tpu_custom_call.1} parent=1 // pred_fallthru
      _
    // Predicated region
    $region34: #{tpu_custom_call.1} parent=1 // pred_check
      _
    $region35: #{tpu_custom_call.1} parent=1 // pred_check_branch
      %34 = sbr.rel (0) target = $region37
    $region36: #{tpu_custom_call.1} parent=1 // pred_region
      _
    $region37: #{tpu_custom_call.1} parent=1 // pred_fallthru
      _
    // Predicated region
    $region38: #{tpu_custom_call.1} parent=1 // pred_check
      _
    $region39: #{tpu_custom_call.1} parent=1 // pred_check_branch
      %36 = sbr.rel (0) target = $region41
    $region40: #{tpu_custom_call.1} parent=1 // pred_region
      _
    $region41: #{tpu_custom_call.1} parent=1 // pred_fallthru
      _
    // Predicated region
    $region42: #{tpu_custom_call.1} parent=1 // pred_check
      _
    $region43: #{tpu_custom_call.1} parent=1 // pred_check_branch
      %38 = sbr.rel (0) target = $region45
    $region44: #{tpu_custom_call.1} parent=1 // pred_region
      _
    $region45: #{tpu_custom_call.1} parent=1 // pred_fallthru
      _
    %v40 = vld [vmem:[%s0] sm:$0xff]
    %v41 = vld [vmem:[%s0 + $0x8] sm:$0xff]
    %v42 = vld [vmem:[%s0 + $0x10] sm:$0xff]
    %v43 = vld [vmem:[%s0 + $0x18] sm:$0xff]
    %v44 = vld [vmem:[%s0 + $0x20] sm:$0xff]
    %v45 = vld [vmem:[%s0 + $0x28] sm:$0xff]
    %v46 = vld [vmem:[%s0 + $0x30] sm:$0xff]
    %v47 = vld [vmem:[%s0 + $0x38] sm:$0xff]
    %v48 = vld [vmem:[%s0 + $0x40] sm:$0xff]
    %v49 = vld [vmem:[%s0 + $0x48] sm:$0xff]
    %v50 = vld [vmem:[%s0 + $0x50] sm:$0xff]
    %v51 = vld [vmem:[%s0 + $0x58] sm:$0xff]
    %v52 = vld [vmem:[%s0 + $0x60] sm:$0xff]
    %v53 = vld [vmem:[%s0 + $0x68] sm:$0xff]
    %v54 = vld [vmem:[%s0 + $0x70] sm:$0xff]
    %v55 = vld [vmem:[%s0 + $0x78] sm:$0xff]
    %v56 = vld [vmem:[%s0 + $0x80] sm:$0xff]
    %v57 = vld [vmem:[%s0 + $0x88] sm:$0xff]
    %v58 = vld [vmem:[%s0 + $0x90] sm:$0xff]
    %v59 = vld [vmem:[%s0 + $0x98] sm:$0xff]
    %v60 = vld [vmem:[%s0 + $0xa0] sm:$0xff]
    %v61 = vld [vmem:[%s0 + $0xa8] sm:$0xff]
    %v62 = vld [vmem:[%s0 + $0xb0] sm:$0xff]
    %v63 = vld [vmem:[%s0 + $0xb8] sm:$0xff]
    %v64 = vld [vmem:[%s0 + $0xc0] sm:$0xff]
    %v65 = vld [vmem:[%s0 + $0xc8] sm:$0xff]
    %v66 = vld [vmem:[%s0 + $0xd0] sm:$0xff]
    %v67 = vld [vmem:[%s0 + $0xd8] sm:$0xff]
    %v68 = vld [vmem:[%s0 + $0xe0] sm:$0xff]
    %v69 = vld [vmem:[%s0 + $0xe8] sm:$0xff]
    %v70 = vld [vmem:[%s0 + $0xf0] sm:$0xff]
    %v71 = vld [vmem:[%s0 + $0xf8] sm:$0xff]
    %v72 = vld [vmem:[%s0 + $0x100] sm:$0xff]
    %v73 = vld [vmem:[%s0 + $0x108] sm:$0xff]
    %v74 = vld [vmem:[%s0 + $0x110] sm:$0xff]
    %v75 = vld [vmem:[%s0 + $0x118] sm:$0xff]
    %v76 = vld [vmem:[%s0 + $0x120] sm:$0xff]
    %v77 = vld [vmem:[%s0 + $0x128] sm:$0xff]
    %v78 = vld [vmem:[%s0 + $0x130] sm:$0xff]
    %v79 = vld [vmem:[%s0 + $0x138] sm:$0xff]
    %v80 = vld [vmem:[%s0 + $0x140] sm:$0xff]
    %v81 = vld [vmem:[%s0 + $0x148] sm:$0xff]
    %v82 = vld [vmem:[%s0 + $0x150] sm:$0xff]
    %v83 = vld [vmem:[%s0 + $0x158] sm:$0xff]
    %v84 = vld [vmem:[%s0 + $0x160] sm:$0xff]
    %v85 = vld [vmem:[%s0 + $0x168] sm:$0xff]
    %v86 = vld [vmem:[%s0 + $0x170] sm:$0xff]
    %v87 = vld [vmem:[%s0 + $0x178] sm:$0xff]
    %v88 = vld [vmem:[%s0 + $0x180] sm:$0xff]
    %v89 = vld [vmem:[%s0 + $0x188] sm:$0xff]
    %v90 = vld [vmem:[%s0 + $0x190] sm:$0xff]
    %v91 = vld [vmem:[%s0 + $0x198] sm:$0xff]
    %v92 = vld [vmem:[%s0 + $0x1a0] sm:$0xff]
    %v93 = vld [vmem:[%s0 + $0x1a8] sm:$0xff]
    %v94 = vld [vmem:[%s0 + $0x1b0] sm:$0xff]
    %v95 = vld [vmem:[%s0 + $0x1b8] sm:$0xff]
    %v96 = vld [vmem:[%s0 + $0x1c0] sm:$0xff]
    %v97 = vld [vmem:[%s0 + $0x1c8] sm:$0xff]
    %v98 = vld [vmem:[%s0 + $0x1d0] sm:$0xff]
    %v99 = vld [vmem:[%s0 + $0x1d8] sm:$0xff]
    %v100 = vld [vmem:[%s0 + $0x1e0] sm:$0xff]
    %v101 = vld [vmem:[%s0 + $0x1e8] sm:$0xff]
    %v102 = vld [vmem:[%s0 + $0x1f0] sm:$0xff]
    %v103 = vld [vmem:[%s0 + $0x1f8] sm:$0xff]
    %v104 = vmax.f32 %v40, 0.0
    %v105 = vmax.f32 %v41, 0.0
    %v106 = vmax.f32 %v42, 0.0
    %v107 = vmax.f32 %v43, 0.0
    %v108 = vmax.f32 %v44, 0.0
    %v109 = vmax.f32 %v45, 0.0
    %v110 = vmax.f32 %v46, 0.0
    %v111 = vmax.f32 %v47, 0.0
    %v112 = vmax.f32 %v48, 0.0
    %v113 = vmax.f32 %v49, 0.0
    %v114 = vmax.f32 %v50, 0.0
    %v115 = vmax.f32 %v51, 0.0
    %v116 = vmax.f32 %v52, 0.0
    %v117 = vmax.f32 %v53, 0.0
    %v118 = vmax.f32 %v54, 0.0
    %v119 = vmax.f32 %v55, 0.0
    %v120 = vmax.f32 %v56, 0.0
    %v121 = vmax.f32 %v57, 0.0
    %v122 = vmax.f32 %v58, 0.0
    %v123 = vmax.f32 %v59, 0.0
    %v124 = vmax.f32 %v60, 0.0
    %v125 = vmax.f32 %v61, 0.0
    %v126 = vmax.f32 %v62, 0.0
    %v127 = vmax.f32 %v63, 0.0
    %v128 = vmax.f32 %v64, 0.0
    %v129 = vmax.f32 %v65, 0.0
    %v130 = vmax.f32 %v66, 0.0
    %v131 = vmax.f32 %v67, 0.0
    %v132 = vmax.f32 %v68, 0.0
    %v133 = vmax.f32 %v69, 0.0
    %v134 = vmax.f32 %v70, 0.0
    %v135 = vmax.f32 %v71, 0.0
    %v136 = vmax.f32 %v72, 0.0
    %v137 = vmax.f32 %v73, 0.0
    %v138 = vmax.f32 %v74, 0.0
    %v139 = vmax.f32 %v75, 0.0
    %v140 = vmax.f32 %v76, 0.0
    %v141 = vmax.f32 %v77, 0.0
    %v142 = vmax.f32 %v78, 0.0
    %v143 = vmax.f32 %v79, 0.0
    %v144 = vmax.f32 %v80, 0.0
    %v145 = vmax.f32 %v81, 0.0
    %v146 = vmax.f32 %v82, 0.0
    %v147 = vmax.f32 %v83, 0.0
    %v148 = vmax.f32 %v84, 0.0
    %v149 = vmax.f32 %v85, 0.0
    %v150 = vmax.f32 %v86, 0.0
    %v151 = vmax.f32 %v87, 0.0
    %v152 = vmax.f32 %v88, 0.0
    %v153 = vmax.f32 %v89, 0.0
    %v154 = vmax.f32 %v90, 0.0
    %v155 = vmax.f32 %v91, 0.0
    %v156 = vmax.f32 %v92, 0.0
    %v157 = vmax.f32 %v93, 0.0
    %v158 = vmax.f32 %v94, 0.0
    %v159 = vmax.f32 %v95, 0.0
    %v160 = vmax.f32 %v96, 0.0
    %v161 = vmax.f32 %v97, 0.0
    %v162 = vmax.f32 %v98, 0.0
    %v163 = vmax.f32 %v99, 0.0
    %v164 = vmax.f32 %v100, 0.0
    %v165 = vmax.f32 %v101, 0.0
    %v166 = vmax.f32 %v102, 0.0
    %v167 = vmax.f32 %v103, 0.0
    %v168 = vpack.c.bf16 %v106, %v104
    %v169 = vpack.c.bf16 %v107, %v105
    %v170 = vpack.c.bf16 %v110, %v108
    %v171 = vpack.c.bf16 %v111, %v109
    %v172 = vpack.c.bf16 %v114, %v112
    %v173 = vpack.c.bf16 %v115, %v113
    %v174 = vpack.c.bf16 %v118, %v116
    %v175 = vpack.c.bf16 %v119, %v117
    %v176 = vpack.c.bf16 %v122, %v120
    %v177 = vpack.c.bf16 %v123, %v121
    %v178 = vpack.c.bf16 %v126, %v124
    %v179 = vpack.c.bf16 %v127, %v125
    %v180 = vpack.c.bf16 %v130, %v128
    %v181 = vpack.c.bf16 %v131, %v129
    %v182 = vpack.c.bf16 %v134, %v132
    %v183 = vpack.c.bf16 %v135, %v133
    %v184 = vpack.c.bf16 %v138, %v136
    %v185 = vpack.c.bf16 %v139, %v137
    %v186 = vpack.c.bf16 %v142, %v140
    %v187 = vpack.c.bf16 %v143, %v141
    %v188 = vpack.c.bf16 %v146, %v144
    %v189 = vpack.c.bf16 %v147, %v145
    %v190 = vpack.c.bf16 %v150, %v148
    %v191 = vpack.c.bf16 %v151, %v149
    %v192 = vpack.c.bf16 %v154, %v152
    %v193 = vpack.c.bf16 %v155, %v153
    %v194 = vpack.c.bf16 %v158, %v156
    %v195 = vpack.c.bf16 %v159, %v157
    %v196 = vpack.c.bf16 %v162, %v160
    %v197 = vpack.c.bf16 %v163, %v161
    %v198 = vpack.c.bf16 %v166, %v164
    %v199 = vpack.c.bf16 %v167, %v165
    %v200 = vld [vmem:[%s1] sm:$0xf]
    %v201 = vld [vmem:[%s1 + $0x4] sm:$0xf]
    %v202 = vld [vmem:[%s1 + $0x8] sm:$0xf]
    %v203 = vld [vmem:[%s1 + $0xc] sm:$0xf]
    %v204 = vld [vmem:[%s1 + $0x10] sm:$0xf]
    %v205 = vld [vmem:[%s1 + $0x14] sm:$0xf]
    %v206 = vld [vmem:[%s1 + $0x18] sm:$0xf]
    %v207 = vld [vmem:[%s1 + $0x1c] sm:$0xf]
    %v208 = vld [vmem:[%s1 + $0x20] sm:$0xf]
    %v209 = vld [vmem:[%s1 + $0x24] sm:$0xf]
    %v210 = vld [vmem:[%s1 + $0x28] sm:$0xf]
    %v211 = vld [vmem:[%s1 + $0x2c] sm:$0xf]
    %v212 = vld [vmem:[%s1 + $0x30] sm:$0xf]
    %v213 = vld [vmem:[%s1 + $0x34] sm:$0xf]
    %v214 = vld [vmem:[%s1 + $0x38] sm:$0xf]
    %v215 = vld [vmem:[%s1 + $0x3c] sm:$0xf]
    %v216 = vld [vmem:[%s1 + $0x40] sm:$0xf]
    %v217 = vld [vmem:[%s1 + $0x44] sm:$0xf]
    %v218 = vld [vmem:[%s1 + $0x48] sm:$0xf]
    %v219 = vld [vmem:[%s1 + $0x4c] sm:$0xf]
    %v220 = vld [vmem:[%s2] sm:$0x1]
    %v222 = vlaneseq
    %v223 = vshrl.u32 %v222, 7
    %v224 = vsub.s32 0, %v223
    %v225 = vrot.slane %v220, %v224
    %v247 = vunpack.c.l.b16 %v200
    %v248 = vunpack.c.l.b16 %v201
    %v249 = vunpack.c.l.b16 %v202
    %v250 = vunpack.c.l.b16 %v203
    %v251 = vunpack.c.l.b16 %v204
    %v252 = vunpack.c.l.b16 %v205
    %v253 = vunpack.c.l.b16 %v206
    %v254 = vunpack.c.l.b16 %v207
    %v255 = vunpack.c.l.b16 %v208
    %v256 = vunpack.c.l.b16 %v209
    %v257 = vunpack.c.l.b16 %v210
    %v258 = vunpack.c.l.b16 %v211
    %v259 = vunpack.c.l.b16 %v212
    %v260 = vunpack.c.l.b16 %v213
    %v261 = vunpack.c.l.b16 %v214
    %v262 = vunpack.c.l.b16 %v215
    %v263 = vunpack.c.l.b16 %v216
    %v264 = vunpack.c.l.b16 %v217
    %v265 = vunpack.c.l.b16 %v218
    %v266 = vunpack.c.l.b16 %v219
    %v267 = vpack.c.b16 %v248, %v247
    %v268 = vpack.c.b16 %v250, %v249
    %v269 = vpack.c.b16 %v252, %v251
    %v270 = vpack.c.b16 %v254, %v253
    %v271 = vpack.c.b16 %v256, %v255
    %v272 = vpack.c.b16 %v258, %v257
    %v273 = vpack.c.b16 %v260, %v259
    %v274 = vpack.c.b16 %v262, %v261
    %v275 = vpack.c.b16 %v264, %v263
    %v276 = vpack.c.b16 %v266, %v265
    %vm287 = vcmask 261120
    %v289 = vsel %vm287, %v169, 0
    %v292 = vsel %vm287, %v171, 0
    %v295 = vsel %vm287, %v173, 0
    %v298 = vsel %vm287, %v175, 0
    %v301 = vsel %vm287, %v177, 0
    %v304 = vsel %vm287, %v179, 0
    %v307 = vsel %vm287, %v181, 0
    %v310 = vsel %vm287, %v183, 0
    %v313 = vsel %vm287, %v185, 0
    %v316 = vsel %vm287, %v187, 0
    %v319 = vsel %vm287, %v189, 0
    %v322 = vsel %vm287, %v191, 0
    %v325 = vsel %vm287, %v193, 0
    %v328 = vsel %vm287, %v195, 0
    %v331 = vsel %vm287, %v197, 0
    %v334 = vsel %vm287, %v199, 0
    %336 = vmatprep.subr.bf16.mxu0 0
    %337 = vmatpush1.bf16.msra.mxu0 %v274
    %338 = vmatprep.subr.bf16.mxu0 0
    %339 = vmatpush1.bf16.msra.mxu0 %v273
    %340 = vmatprep.subr.bf16.mxu0 0
    %341 = vmatpush1.bf16.msra.mxu0 %v272
    %342 = vmatprep.subr.bf16.mxu0 0
    %343 = vmatpush1.bf16.msra.mxu0 %v271
    %344 = vmatprep.subr.bf16.mxu0 0
    %345 = vmatpush1.bf16.msra.mxu0 %v270
    %346 = vmatprep.subr.bf16.mxu0 0
    %347 = vmatpush1.bf16.msra.mxu0 %v269
    %348 = vmatprep.subr.bf16.mxu0 0
    %349 = vmatpush1.bf16.msra.mxu0 %v268
    %350 = vmatprep.subr.bf16.mxu0 0
    %351 = vmatpush1.bf16.msra.mxu0 %v267
    %352 = vmatprep.subr.bf16.mxu0 0
    %353 = vmatpush2.bf16.msra.mxu0 0
    %354 = vmatprep.subr.bf16.mxu0 0
    %355 = vmatpush2.bf16.msra.mxu0 0
    %356 = vmatprep.subr.bf16.mxu0 0
    %357 = vmatpush2.bf16.msra.mxu0 0
    %358 = vmatprep.subr.bf16.mxu0 0
    %359 = vmatpush2.bf16.msra.mxu0 0
    %360 = vmatprep.subr.bf16.mxu0 0
    %361 = vmatpush2.bf16.msra.mxu0 0
    %362 = vmatprep.subr.bf16.mxu0 0
    %363 = vmatpush2.bf16.msra.mxu0 0
    %364 = vmatprep.subr.bf16.mxu0 0
    %365 = vmatpush2.bf16.msra.mxu0 %v276
    %366 = vmatprep.subr.bf16.mxu0 0
    %367 = vmatpush2.bf16.msra.mxu0 %v275
    %368 = vmatprep.mubr.bf16.mxu0 %v289
    %369 = vmatmul.mubr.bf16.gmra.mxu0 %v168
    %v370 = vpop.f32.mrf.mxu0
    %v371 = vadd.f32 %v225, %v370
    %v372 = vpop.f32.mrf.mxu0
    %v373 = vpop.f32.mrf.mxu0
    %v374 = vadd.f32 %v225, %v373
    %v375 = vpop.f32.mrf.mxu0
    %376 = vmatprep.mubr.bf16.mxu0 %v292
    %377 = vmatmul.mubr.bf16.gmra.mxu0 %v170
    %v378 = vpop.f32.mrf.mxu0
    %v379 = vadd.f32 %v225, %v378
    %v380 = vpop.f32.mrf.mxu0
    %v381 = vpop.f32.mrf.mxu0
    %v382 = vadd.f32 %v225, %v381
    %v383 = vpop.f32.mrf.mxu0
    %384 = vmatprep.mubr.bf16.mxu0 %v295
    %385 = vmatmul.mubr.bf16.gmra.mxu0 %v172
    %v386 = vpop.f32.mrf.mxu0
    %v387 = vadd.f32 %v225, %v386
    %v388 = vpop.f32.mrf.mxu0
    %v389 = vpop.f32.mrf.mxu0
    %v390 = vadd.f32 %v225, %v389
    %v391 = vpop.f32.mrf.mxu0
    %392 = vmatprep.mubr.bf16.mxu0 %v298
    %393 = vmatmul.mubr.bf16.gmra.mxu0 %v174
    %v394 = vpop.f32.mrf.mxu0
    %v395 = vadd.f32 %v225, %v394
    %v396 = vpop.f32.mrf.mxu0
    %v397 = vpop.f32.mrf.mxu0
    %v398 = vadd.f32 %v225, %v397
    %v399 = vpop.f32.mrf.mxu0
    %400 = vmatprep.mubr.bf16.mxu0 %v301
    %401 = vmatmul.mubr.bf16.gmra.mxu0 %v176
    %v402 = vpop.f32.mrf.mxu0
    %v403 = vadd.f32 %v225, %v402
    %v404 = vpop.f32.mrf.mxu0
    %v405 = vpop.f32.mrf.mxu0
    %v406 = vadd.f32 %v225, %v405
    %v407 = vpop.f32.mrf.mxu0
    %408 = vmatprep.mubr.bf16.mxu0 %v304
    %409 = vmatmul.mubr.bf16.gmra.mxu0 %v178
    %v410 = vpop.f32.mrf.mxu0
    %v411 = vadd.f32 %v225, %v410
    %v412 = vpop.f32.mrf.mxu0
    %v413 = vpop.f32.mrf.mxu0
    %v414 = vadd.f32 %v225, %v413
    %v415 = vpop.f32.mrf.mxu0
    %416 = vmatprep.mubr.bf16.mxu0 %v307
    %417 = vmatmul.mubr.bf16.gmra.mxu0 %v180
    %v418 = vpop.f32.mrf.mxu0
    %v419 = vadd.f32 %v225, %v418
    %v420 = vpop.f32.mrf.mxu0
    %v421 = vpop.f32.mrf.mxu0
    %v422 = vadd.f32 %v225, %v421
    %v423 = vpop.f32.mrf.mxu0
    %424 = vmatprep.mubr.bf16.mxu0 %v310
    %425 = vmatmul.mubr.bf16.gmra.mxu0 %v182
    %v426 = vpop.f32.mrf.mxu0
    %v427 = vadd.f32 %v225, %v426
    %v428 = vpop.f32.mrf.mxu0
    %v429 = vpop.f32.mrf.mxu0
    %v430 = vadd.f32 %v225, %v429
    %v431 = vpop.f32.mrf.mxu0
    %432 = vmatprep.mubr.bf16.mxu0 %v313
    %433 = vmatmul.mubr.bf16.gmra.mxu0 %v184
    %v434 = vpop.f32.mrf.mxu0
    %v435 = vadd.f32 %v225, %v434
    %v436 = vpop.f32.mrf.mxu0
    %v437 = vpop.f32.mrf.mxu0
    %v438 = vadd.f32 %v225, %v437
    %v439 = vpop.f32.mrf.mxu0
    %440 = vmatprep.mubr.bf16.mxu0 %v316
    %441 = vmatmul.mubr.bf16.gmra.mxu0 %v186
    %v442 = vpop.f32.mrf.mxu0
    %v443 = vadd.f32 %v225, %v442
    %v444 = vpop.f32.mrf.mxu0
    %v445 = vpop.f32.mrf.mxu0
    %v446 = vadd.f32 %v225, %v445
    %v447 = vpop.f32.mrf.mxu0
    %448 = vmatprep.mubr.bf16.mxu0 %v319
    %449 = vmatmul.mubr.bf16.gmra.mxu0 %v188
    %v450 = vpop.f32.mrf.mxu0
    %v451 = vadd.f32 %v225, %v450
    %v452 = vpop.f32.mrf.mxu0
    %v453 = vpop.f32.mrf.mxu0
    %v454 = vadd.f32 %v225, %v453
    %v455 = vpop.f32.mrf.mxu0
    %456 = vmatprep.mubr.bf16.mxu0 %v322
    %457 = vmatmul.mubr.bf16.gmra.mxu0 %v190
    %v458 = vpop.f32.mrf.mxu0
    %v459 = vadd.f32 %v225, %v458
    %v460 = vpop.f32.mrf.mxu0
    %v461 = vpop.f32.mrf.mxu0
    %v462 = vadd.f32 %v225, %v461
    %v463 = vpop.f32.mrf.mxu0
    %464 = vmatprep.mubr.bf16.mxu0 %v325
    %465 = vmatmul.mubr.bf16.gmra.mxu0 %v192
    %v466 = vpop.f32.mrf.mxu0
    %v467 = vadd.f32 %v225, %v466
    %v468 = vpop.f32.mrf.mxu0
    %v469 = vpop.f32.mrf.mxu0
    %v470 = vadd.f32 %v225, %v469
    %v471 = vpop.f32.mrf.mxu0
    %472 = vmatprep.mubr.bf16.mxu0 %v328
    %473 = vmatmul.mubr.bf16.gmra.mxu0 %v194
    %v474 = vpop.f32.mrf.mxu0
    %v475 = vadd.f32 %v225, %v474
    %v476 = vpop.f32.mrf.mxu0
    %v477 = vpop.f32.mrf.mxu0
    %v478 = vadd.f32 %v225, %v477
    %v479 = vpop.f32.mrf.mxu0
    %480 = vmatprep.mubr.bf16.mxu0 %v331
    %481 = vmatmul.mubr.bf16.gmra.mxu0 %v196
    %v482 = vpop.f32.mrf.mxu0
    %v483 = vadd.f32 %v225, %v482
    %v484 = vpop.f32.mrf.mxu0
    %v485 = vpop.f32.mrf.mxu0
    %v486 = vadd.f32 %v225, %v485
    %v487 = vpop.f32.mrf.mxu0
    %488 = vmatprep.mubr.bf16.mxu0 %v334
    %489 = vmatmul.mubr.bf16.gmra.mxu0 %v198
    %v490 = vpop.f32.mrf.mxu0
    %v491 = vadd.f32 %v225, %v490
    %v492 = vpop.f32.mrf.mxu0
    %v493 = vpop.f32.mrf.mxu0
    %v494 = vadd.f32 %v225, %v493
    %v495 = vpop.f32.mrf.mxu0
    %496 = vdwg.mxu0
    %497 = vadd.xlane.f32.xlu0 %v371
    %v498 = vpop.xlane.xlu0 %497
    %499 = vadd.xlane.f32.xlu0 %v374
    %v500 = vpop.xlane.xlu0 %499
    %501 = vadd.xlane.f32.xlu0 %v379
    %v502 = vpop.xlane.xlu0 %501
    %503 = vadd.xlane.f32.xlu0 %v382
    %v504 = vpop.xlane.xlu0 %503
    %505 = vadd.xlane.f32.xlu0 %v387
    %v506 = vpop.xlane.xlu0 %505
    %507 = vadd.xlane.f32.xlu0 %v390
    %v508 = vpop.xlane.xlu0 %507
    %509 = vadd.xlane.f32.xlu0 %v395
    %v510 = vpop.xlane.xlu0 %509
    %511 = vadd.xlane.f32.xlu0 %v398
    %v512 = vpop.xlane.xlu0 %511
    %513 = vadd.xlane.f32.xlu0 %v403
    %v514 = vpop.xlane.xlu0 %513
    %515 = vadd.xlane.f32.xlu0 %v406
    %v516 = vpop.xlane.xlu0 %515
    %517 = vadd.xlane.f32.xlu0 %v411
    %v518 = vpop.xlane.xlu0 %517
    %519 = vadd.xlane.f32.xlu0 %v414
    %v520 = vpop.xlane.xlu0 %519
    %521 = vadd.xlane.f32.xlu0 %v419
    %v522 = vpop.xlane.xlu0 %521
    %523 = vadd.xlane.f32.xlu0 %v422
    %v524 = vpop.xlane.xlu0 %523
    %525 = vadd.xlane.f32.xlu0 %v427
    %v526 = vpop.xlane.xlu0 %525
    %527 = vadd.xlane.f32.xlu0 %v430
    %v528 = vpop.xlane.xlu0 %527
    %529 = vadd.xlane.f32.xlu0 %v435
    %v530 = vpop.xlane.xlu0 %529
    %531 = vadd.xlane.f32.xlu0 %v438
    %v532 = vpop.xlane.xlu0 %531
    %533 = vadd.xlane.f32.xlu0 %v443
    %v534 = vpop.xlane.xlu0 %533
    %535 = vadd.xlane.f32.xlu0 %v446
    %v536 = vpop.xlane.xlu0 %535
    %537 = vadd.xlane.f32.xlu0 %v451
    %v538 = vpop.xlane.xlu0 %537
    %539 = vadd.xlane.f32.xlu0 %v454
    %v540 = vpop.xlane.xlu0 %539
    %541 = vadd.xlane.f32.xlu0 %v459
    %v542 = vpop.xlane.xlu0 %541
    %543 = vadd.xlane.f32.xlu0 %v462
    %v544 = vpop.xlane.xlu0 %543
    %545 = vadd.xlane.f32.xlu0 %v467
    %v546 = vpop.xlane.xlu0 %545
    %547 = vadd.xlane.f32.xlu0 %v470
    %v548 = vpop.xlane.xlu0 %547
    %549 = vadd.xlane.f32.xlu0 %v475
    %v550 = vpop.xlane.xlu0 %549
    %551 = vadd.xlane.f32.xlu0 %v478
    %v552 = vpop.xlane.xlu0 %551
    %553 = vadd.xlane.f32.xlu0 %v483
    %v554 = vpop.xlane.xlu0 %553
    %555 = vadd.xlane.f32.xlu0 %v486
    %v556 = vpop.xlane.xlu0 %555
    %557 = vadd.xlane.f32.xlu0 %v491
    %v558 = vpop.xlane.xlu0 %557
    %559 = vadd.xlane.f32.xlu0 %v494
    %v560 = vpop.xlane.xlu0 %559
    %v561 = vrcp.pop 128.0
    %v562 = vmul.f32 %v498, %v561
    %v563 = vmul.f32 %v500, %v561
    %v564 = vmul.f32 %v502, %v561
    %v565 = vmul.f32 %v504, %v561
    %v566 = vmul.f32 %v506, %v561
    %v567 = vmul.f32 %v508, %v561
    %v568 = vmul.f32 %v510, %v561
    %v569 = vmul.f32 %v512, %v561
    %v570 = vmul.f32 %v514, %v561
    %v571 = vmul.f32 %v516, %v561
    %v572 = vmul.f32 %v518, %v561
    %v573 = vmul.f32 %v520, %v561
    %v574 = vmul.f32 %v522, %v561
    %v575 = vmul.f32 %v524, %v561
    %v576 = vmul.f32 %v526, %v561
    %v577 = vmul.f32 %v528, %v561
    %v578 = vmul.f32 %v530, %v561
    %v579 = vmul.f32 %v532, %v561
    %v580 = vmul.f32 %v534, %v561
    %v581 = vmul.f32 %v536, %v561
    %v582 = vmul.f32 %v538, %v561
    %v583 = vmul.f32 %v540, %v561
    %v584 = vmul.f32 %v542, %v561
    %v585 = vmul.f32 %v544, %v561
    %v586 = vmul.f32 %v546, %v561
    %v587 = vmul.f32 %v548, %v561
    %v588 = vmul.f32 %v550, %v561
    %v589 = vmul.f32 %v552, %v561
    %v590 = vmul.f32 %v554, %v561
    %v591 = vmul.f32 %v556, %v561
    %v592 = vmul.f32 %v558, %v561
    %v593 = vmul.f32 %v560, %v561
    %v594 = vsub.f32 %v371, %v562
    %v595 = vsub.f32 %v374, %v563
    %v596 = vsub.f32 %v379, %v564
    %v597 = vsub.f32 %v382, %v565
    %v598 = vsub.f32 %v387, %v566
    %v599 = vsub.f32 %v390, %v567
    %v600 = vsub.f32 %v395, %v568
    %v601 = vsub.f32 %v398, %v569
    %v602 = vsub.f32 %v403, %v570
    %v603 = vsub.f32 %v406, %v571
    %v604 = vsub.f32 %v411, %v572
    %v605 = vsub.f32 %v414, %v573
    %v606 = vsub.f32 %v419, %v574
    %v607 = vsub.f32 %v422, %v575
    %v608 = vsub.f32 %v427, %v576
    %v609 = vsub.f32 %v430, %v577
    %v610 = vsub.f32 %v435, %v578
    %v611 = vsub.f32 %v438, %v579
    %v612 = vsub.f32 %v443, %v580
    %v613 = vsub.f32 %v446, %v581
    %v614 = vsub.f32 %v451, %v582
    %v615 = vsub.f32 %v454, %v583
    %v616 = vsub.f32 %v459, %v584
    %v617 = vsub.f32 %v462, %v585
    %v618 = vsub.f32 %v467, %v586
    %v619 = vsub.f32 %v470, %v587
    %v620 = vsub.f32 %v475, %v588
    %v621 = vsub.f32 %v478, %v589
    %v622 = vsub.f32 %v483, %v590
    %v623 = vsub.f32 %v486, %v591
    %v624 = vsub.f32 %v491, %v592
    %v625 = vsub.f32 %v494, %v593
    %v626 = vmul.f32 %v594, %v594
    %v627 = vmul.f32 %v595, %v595
    %v628 = vmul.f32 %v596, %v596
    %v629 = vmul.f32 %v597, %v597
    %v630 = vmul.f32 %v598, %v598
    %v631 = vmul.f32 %v599, %v599
    %v632 = vmul.f32 %v600, %v600
    %v633 = vmul.f32 %v601, %v601
    %v634 = vmul.f32 %v602, %v602
    %v635 = vmul.f32 %v603, %v603
    %v636 = vmul.f32 %v604, %v604
    %v637 = vmul.f32 %v605, %v605
    %v638 = vmul.f32 %v606, %v606
    %v639 = vmul.f32 %v607, %v607
    %v640 = vmul.f32 %v608, %v608
    %v641 = vmul.f32 %v609, %v609
    %v642 = vmul.f32 %v610, %v610
    %v643 = vmul.f32 %v611, %v611
    %v644 = vmul.f32 %v612, %v612
    %v645 = vmul.f32 %v613, %v613
    %v646 = vmul.f32 %v614, %v614
    %v647 = vmul.f32 %v615, %v615
    %v648 = vmul.f32 %v616, %v616
    %v649 = vmul.f32 %v617, %v617
    %v650 = vmul.f32 %v618, %v618
    %v651 = vmul.f32 %v619, %v619
    %v652 = vmul.f32 %v620, %v620
    %v653 = vmul.f32 %v621, %v621
    %v654 = vmul.f32 %v622, %v622
    %v655 = vmul.f32 %v623, %v623
    %v656 = vmul.f32 %v624, %v624
    %v657 = vmul.f32 %v625, %v625
    %658 = vadd.xlane.f32.xlu0 %v626
    %v659 = vpop.xlane.xlu0 %658
    %660 = vadd.xlane.f32.xlu0 %v627
    %v661 = vpop.xlane.xlu0 %660
    %662 = vadd.xlane.f32.xlu0 %v628
    %v663 = vpop.xlane.xlu0 %662
    %664 = vadd.xlane.f32.xlu0 %v629
    %v665 = vpop.xlane.xlu0 %664
    %666 = vadd.xlane.f32.xlu0 %v630
    %v667 = vpop.xlane.xlu0 %666
    %668 = vadd.xlane.f32.xlu0 %v631
    %v669 = vpop.xlane.xlu0 %668
    %670 = vadd.xlane.f32.xlu0 %v632
    %v671 = vpop.xlane.xlu0 %670
    %672 = vadd.xlane.f32.xlu0 %v633
    %v673 = vpop.xlane.xlu0 %672
    %674 = vadd.xlane.f32.xlu0 %v634
    %v675 = vpop.xlane.xlu0 %674
    %676 = vadd.xlane.f32.xlu0 %v635
    %v677 = vpop.xlane.xlu0 %676
    %678 = vadd.xlane.f32.xlu0 %v636
    %v679 = vpop.xlane.xlu0 %678
    %680 = vadd.xlane.f32.xlu0 %v637
    %v681 = vpop.xlane.xlu0 %680
    %682 = vadd.xlane.f32.xlu0 %v638
    %v683 = vpop.xlane.xlu0 %682
    %684 = vadd.xlane.f32.xlu0 %v639
    %v685 = vpop.xlane.xlu0 %684
    %686 = vadd.xlane.f32.xlu0 %v640
    %v687 = vpop.xlane.xlu0 %686
    %688 = vadd.xlane.f32.xlu0 %v641
    %v689 = vpop.xlane.xlu0 %688
    %690 = vadd.xlane.f32.xlu0 %v642
    %v691 = vpop.xlane.xlu0 %690
    %692 = vadd.xlane.f32.xlu0 %v643
    %v693 = vpop.xlane.xlu0 %692
    %694 = vadd.xlane.f32.xlu0 %v644
    %v695 = vpop.xlane.xlu0 %694
    %696 = vadd.xlane.f32.xlu0 %v645
    %v697 = vpop.xlane.xlu0 %696
    %698 = vadd.xlane.f32.xlu0 %v646
    %v699 = vpop.xlane.xlu0 %698
    %700 = vadd.xlane.f32.xlu0 %v647
    %v701 = vpop.xlane.xlu0 %700
    %702 = vadd.xlane.f32.xlu0 %v648
    %v703 = vpop.xlane.xlu0 %702
    %704 = vadd.xlane.f32.xlu0 %v649
    %v705 = vpop.xlane.xlu0 %704
    %706 = vadd.xlane.f32.xlu0 %v650
    %v707 = vpop.xlane.xlu0 %706
    %708 = vadd.xlane.f32.xlu0 %v651
    %v709 = vpop.xlane.xlu0 %708
    %710 = vadd.xlane.f32.xlu0 %v652
    %v711 = vpop.xlane.xlu0 %710
    %712 = vadd.xlane.f32.xlu0 %v653
    %v713 = vpop.xlane.xlu0 %712
    %714 = vadd.xlane.f32.xlu0 %v654
    %v715 = vpop.xlane.xlu0 %714
    %716 = vadd.xlane.f32.xlu0 %v655
    %v717 = vpop.xlane.xlu0 %716
    %718 = vadd.xlane.f32.xlu0 %v656
    %v719 = vpop.xlane.xlu0 %718
    %720 = vadd.xlane.f32.xlu0 %v657
    %v721 = vpop.xlane.xlu0 %720
    %v722 = vmul.f32 %v659, %v561
    %v723 = vmul.f32 %v661, %v561
    %v724 = vmul.f32 %v663, %v561
    %v725 = vmul.f32 %v665, %v561
    %v726 = vmul.f32 %v667, %v561
    %v727 = vmul.f32 %v669, %v561
    %v728 = vmul.f32 %v671, %v561
    %v729 = vmul.f32 %v673, %v561
    %v730 = vmul.f32 %v675, %v561
    %v731 = vmul.f32 %v677, %v561
    %v732 = vmul.f32 %v679, %v561
    %v733 = vmul.f32 %v681, %v561
    %v734 = vmul.f32 %v683, %v561
    %v735 = vmul.f32 %v685, %v561
    %v736 = vmul.f32 %v687, %v561
    %v737 = vmul.f32 %v689, %v561
    %v738 = vmul.f32 %v691, %v561
    %v739 = vmul.f32 %v693, %v561
    %v740 = vmul.f32 %v695, %v561
    %v741 = vmul.f32 %v697, %v561
    %v742 = vmul.f32 %v699, %v561
    %v743 = vmul.f32 %v701, %v561
    %v744 = vmul.f32 %v703, %v561
    %v745 = vmul.f32 %v705, %v561
    %v746 = vmul.f32 %v707, %v561
    %v747 = vmul.f32 %v709, %v561
    %v748 = vmul.f32 %v711, %v561
    %v749 = vmul.f32 %v713, %v561
    %v750 = vmul.f32 %v715, %v561
    %v751 = vmul.f32 %v717, %v561
    %v752 = vmul.f32 %v719, %v561
    %v753 = vmul.f32 %v721, %v561
    %v754 = vadd.f32 %v722, 1e-05
    %v755 = vadd.f32 %v723, 1e-05
    %v756 = vadd.f32 %v724, 1e-05
    %v757 = vadd.f32 %v725, 1e-05
    %v758 = vadd.f32 %v726, 1e-05
    %v759 = vadd.f32 %v727, 1e-05
    %v760 = vadd.f32 %v728, 1e-05
    %v761 = vadd.f32 %v729, 1e-05
    %v762 = vadd.f32 %v730, 1e-05
    %v763 = vadd.f32 %v731, 1e-05
    %v764 = vadd.f32 %v732, 1e-05
    %v765 = vadd.f32 %v733, 1e-05
    %v766 = vadd.f32 %v734, 1e-05
    %v767 = vadd.f32 %v735, 1e-05
    %v768 = vadd.f32 %v736, 1e-05
    %v769 = vadd.f32 %v737, 1e-05
    %v770 = vadd.f32 %v738, 1e-05
    %v771 = vadd.f32 %v739, 1e-05
    %v772 = vadd.f32 %v740, 1e-05
    %v773 = vadd.f32 %v741, 1e-05
    %v774 = vadd.f32 %v742, 1e-05
    %v775 = vadd.f32 %v743, 1e-05
    %v776 = vadd.f32 %v744, 1e-05
    %v777 = vadd.f32 %v745, 1e-05
    %v778 = vadd.f32 %v746, 1e-05
    %v779 = vadd.f32 %v747, 1e-05
    %v780 = vadd.f32 %v748, 1e-05
    %v781 = vadd.f32 %v749, 1e-05
    %v782 = vadd.f32 %v750, 1e-05
    %v783 = vadd.f32 %v751, 1e-05
    %v784 = vadd.f32 %v752, 1e-05
    %v785 = vadd.f32 %v753, 1e-05
    %v786 = vrsqrt.pop %v754
    %v787 = vrsqrt.pop %v755
    %v788 = vrsqrt.pop %v756
    %v789 = vrsqrt.pop %v757
    %v790 = vrsqrt.pop %v758
    %v791 = vrsqrt.pop %v759
    %v792 = vrsqrt.pop %v760
    %v793 = vrsqrt.pop %v761
    %v794 = vrsqrt.pop %v762
    %v795 = vrsqrt.pop %v763
    %v796 = vrsqrt.pop %v764
    %v797 = vrsqrt.pop %v765
    %v798 = vrsqrt.pop %v766
    %v799 = vrsqrt.pop %v767
    %v800 = vrsqrt.pop %v768
    %v801 = vrsqrt.pop %v769
    %v802 = vrsqrt.pop %v770
    %v803 = vrsqrt.pop %v771
    %v804 = vrsqrt.pop %v772
    %v805 = vrsqrt.pop %v773
    %v806 = vrsqrt.pop %v774
    %v807 = vrsqrt.pop %v775
    %v808 = vrsqrt.pop %v776
    %v809 = vrsqrt.pop %v777
    %v810 = vrsqrt.pop %v778
    %v811 = vrsqrt.pop %v779
    %v812 = vrsqrt.pop %v780
    %v813 = vrsqrt.pop %v781
    %v814 = vrsqrt.pop %v782
    %v815 = vrsqrt.pop %v783
    %v816 = vrsqrt.pop %v784
    %v817 = vrsqrt.pop %v785
    %v818 = vmul.f32 %v594, %v786
    %v819 = vmul.f32 %v595, %v787
    %v820 = vmul.f32 %v596, %v788
    %v821 = vmul.f32 %v597, %v789
    %v822 = vmul.f32 %v598, %v790
    %v823 = vmul.f32 %v599, %v791
    %v824 = vmul.f32 %v600, %v792
    %v825 = vmul.f32 %v601, %v793
    %v826 = vmul.f32 %v602, %v794
    %v827 = vmul.f32 %v603, %v795
    %v828 = vmul.f32 %v604, %v796
    %v829 = vmul.f32 %v605, %v797
    %v830 = vmul.f32 %v606, %v798
    %v831 = vmul.f32 %v607, %v799
    %v832 = vmul.f32 %v608, %v800
    %v833 = vmul.f32 %v609, %v801
    %v834 = vmul.f32 %v610, %v802
    %v835 = vmul.f32 %v611, %v803
    %v836 = vmul.f32 %v612, %v804
    %v837 = vmul.f32 %v613, %v805
    %v838 = vmul.f32 %v614, %v806
    %v839 = vmul.f32 %v615, %v807
    %v840 = vmul.f32 %v616, %v808
    %v841 = vmul.f32 %v617, %v809
    %v842 = vmul.f32 %v618, %v810
    %v843 = vmul.f32 %v619, %v811
    %v844 = vmul.f32 %v620, %v812
    %v845 = vmul.f32 %v621, %v813
    %v846 = vmul.f32 %v622, %v814
    %v847 = vmul.f32 %v623, %v815
    %v848 = vmul.f32 %v624, %v816
    %v849 = vmul.f32 %v625, %v817
    %v850 = vld [vmem:[%s3] sm:$0x1]
    %v852 = vlaneseq
    %v853 = vshrl.u32 %v852, 7
    %v854 = vsub.s32 0, %v853
    %v855 = vrot.slane %v850, %v854
    %v857 = vmul.f32 %v818, %v855
    %v858 = vmul.f32 %v819, %v855
    %v859 = vmul.f32 %v820, %v855
    %v860 = vmul.f32 %v821, %v855
    %v861 = vmul.f32 %v822, %v855
    %v862 = vmul.f32 %v823, %v855
    %v863 = vmul.f32 %v824, %v855
    %v864 = vmul.f32 %v825, %v855
    %v865 = vmul.f32 %v826, %v855
    %v866 = vmul.f32 %v827, %v855
    %v867 = vmul.f32 %v828, %v855
    %v868 = vmul.f32 %v829, %v855
    %v869 = vmul.f32 %v830, %v855
    %v870 = vmul.f32 %v831, %v855
    %v871 = vmul.f32 %v832, %v855
    %v872 = vmul.f32 %v833, %v855
    %v873 = vmul.f32 %v834, %v855
    %v874 = vmul.f32 %v835, %v855
    %v875 = vmul.f32 %v836, %v855
    %v876 = vmul.f32 %v837, %v855
    %v877 = vmul.f32 %v838, %v855
    %v878 = vmul.f32 %v839, %v855
    %v879 = vmul.f32 %v840, %v855
    %v880 = vmul.f32 %v841, %v855
    %v881 = vmul.f32 %v842, %v855
    %v882 = vmul.f32 %v843, %v855
    %v883 = vmul.f32 %v844, %v855
    %v884 = vmul.f32 %v845, %v855
    %v885 = vmul.f32 %v846, %v855
    %v886 = vmul.f32 %v847, %v855
    %v887 = vmul.f32 %v848, %v855
    %v888 = vmul.f32 %v849, %v855
    %v889 = vld [vmem:[%s4] sm:$0x1]
    %v891 = vlaneseq
    %v892 = vshrl.u32 %v891, 7
    %v893 = vsub.s32 0, %v892
    %v894 = vrot.slane %v889, %v893
    %v896 = vadd.f32 %v857, %v894
    %v897 = vadd.f32 %v858, %v894
    %v898 = vadd.f32 %v859, %v894
    %v899 = vadd.f32 %v860, %v894
    %v900 = vadd.f32 %v861, %v894
    %v901 = vadd.f32 %v862, %v894
    %v902 = vadd.f32 %v863, %v894
    %v903 = vadd.f32 %v864, %v894
    %v904 = vadd.f32 %v865, %v894
    %v905 = vadd.f32 %v866, %v894
    %v906 = vadd.f32 %v867, %v894
    %v907 = vadd.f32 %v868, %v894
    %v908 = vadd.f32 %v869, %v894
    %v909 = vadd.f32 %v870, %v894
    %v910 = vadd.f32 %v871, %v894
    %v911 = vadd.f32 %v872, %v894
    %v912 = vadd.f32 %v873, %v894
    %v913 = vadd.f32 %v874, %v894
    %v914 = vadd.f32 %v875, %v894
    %v915 = vadd.f32 %v876, %v894
    %v916 = vadd.f32 %v877, %v894
    %v917 = vadd.f32 %v878, %v894
    %v918 = vadd.f32 %v879, %v894
    %v919 = vadd.f32 %v880, %v894
    %v920 = vadd.f32 %v881, %v894
    %v921 = vadd.f32 %v882, %v894
    %v922 = vadd.f32 %v883, %v894
    %v923 = vadd.f32 %v884, %v894
    %v924 = vadd.f32 %v885, %v894
    %v925 = vadd.f32 %v886, %v894
    %v926 = vadd.f32 %v887, %v894
    %v927 = vadd.f32 %v888, %v894
    %v928 = vmax.f32 %v896, 0.0
    %v929 = vmax.f32 %v897, 0.0
    %v930 = vmax.f32 %v898, 0.0
    %v931 = vmax.f32 %v899, 0.0
    %v932 = vmax.f32 %v900, 0.0
    %v933 = vmax.f32 %v901, 0.0
    %v934 = vmax.f32 %v902, 0.0
    %v935 = vmax.f32 %v903, 0.0
    %v936 = vmax.f32 %v904, 0.0
    %v937 = vmax.f32 %v905, 0.0
    %v938 = vmax.f32 %v906, 0.0
    %v939 = vmax.f32 %v907, 0.0
    %v940 = vmax.f32 %v908, 0.0
    %v941 = vmax.f32 %v909, 0.0
    %v942 = vmax.f32 %v910, 0.0
    %v943 = vmax.f32 %v911, 0.0
    %v944 = vmax.f32 %v912, 0.0
    %v945 = vmax.f32 %v913, 0.0
    %v946 = vmax.f32 %v914, 0.0
    %v947 = vmax.f32 %v915, 0.0
    %v948 = vmax.f32 %v916, 0.0
    %v949 = vmax.f32 %v917, 0.0
    %v950 = vmax.f32 %v918, 0.0
    %v951 = vmax.f32 %v919, 0.0
    %v952 = vmax.f32 %v920, 0.0
    %v953 = vmax.f32 %v921, 0.0
    %v954 = vmax.f32 %v922, 0.0
    %v955 = vmax.f32 %v923, 0.0
    %v956 = vmax.f32 %v924, 0.0
    %v957 = vmax.f32 %v925, 0.0
    %v958 = vmax.f32 %v926, 0.0
    %v959 = vmax.f32 %v927, 0.0
    %v960 = vpack.c.bf16 %v929, %v928
    %v961 = vpack.c.bf16 %v931, %v930
    %v962 = vpack.c.bf16 %v933, %v932
    %v963 = vpack.c.bf16 %v935, %v934
    %v964 = vpack.c.bf16 %v937, %v936
    %v965 = vpack.c.bf16 %v939, %v938
    %v966 = vpack.c.bf16 %v941, %v940
    %v967 = vpack.c.bf16 %v943, %v942
    %v968 = vpack.c.bf16 %v945, %v944
    %v969 = vpack.c.bf16 %v947, %v946
    %v970 = vpack.c.bf16 %v949, %v948
    %v971 = vpack.c.bf16 %v951, %v950
    %v972 = vpack.c.bf16 %v953, %v952
    %v973 = vpack.c.bf16 %v955, %v954
    %v974 = vpack.c.bf16 %v957, %v956
    %v975 = vpack.c.bf16 %v959, %v958
    %v976 = vld [vmem:[%s5] sm:$0xf]
    %v977 = vld [vmem:[%s5 + $0x4] sm:$0xf]
    %v978 = vld [vmem:[%s5 + $0x8] sm:$0xf]
    %v979 = vld [vmem:[%s5 + $0xc] sm:$0xf]
    %v980 = vld [vmem:[%s5 + $0x10] sm:$0xf]
    %v981 = vld [vmem:[%s5 + $0x14] sm:$0xf]
    %v982 = vld [vmem:[%s5 + $0x18] sm:$0xf]
    %v983 = vld [vmem:[%s5 + $0x1c] sm:$0xf]
    %v984 = vld [vmem:[%s5 + $0x20] sm:$0xf]
    %v985 = vld [vmem:[%s5 + $0x24] sm:$0xf]
    %v986 = vld [vmem:[%s5 + $0x28] sm:$0xf]
    %v987 = vld [vmem:[%s5 + $0x2c] sm:$0xf]
    %v988 = vld [vmem:[%s5 + $0x30] sm:$0xf]
    %v989 = vld [vmem:[%s5 + $0x34] sm:$0xf]
    %v990 = vld [vmem:[%s5 + $0x38] sm:$0xf]
    %v991 = vld [vmem:[%s5 + $0x3c] sm:$0xf]
    %v992 = vld [vmem:[%s6] sm:$0x1]
    %v994 = vlaneseq
    %v995 = vshrl.u32 %v994, 7
    %v996 = vsub.s32 0, %v995
    %v997 = vrot.slane %v992, %v996
    %v1015 = vunpack.c.l.b16 %v976
    %v1016 = vunpack.c.l.b16 %v977
    %v1017 = vunpack.c.l.b16 %v978
    %v1018 = vunpack.c.l.b16 %v979
    %v1019 = vunpack.c.l.b16 %v980
    %v1020 = vunpack.c.l.b16 %v981
    %v1021 = vunpack.c.l.b16 %v982
    %v1022 = vunpack.c.l.b16 %v983
    %v1023 = vunpack.c.l.b16 %v984
    %v1024 = vunpack.c.l.b16 %v985
    %v1025 = vunpack.c.l.b16 %v986
    %v1026 = vunpack.c.l.b16 %v987
    %v1027 = vunpack.c.l.b16 %v988
    %v1028 = vunpack.c.l.b16 %v989
    %v1029 = vunpack.c.l.b16 %v990
    %v1030 = vunpack.c.l.b16 %v991
    %v1031 = vpack.c.b16 %v1016, %v1015
    %v1032 = vpack.c.b16 %v1018, %v1017
    %v1033 = vpack.c.b16 %v1020, %v1019
    %v1034 = vpack.c.b16 %v1022, %v1021
    %v1035 = vpack.c.b16 %v1024, %v1023
    %v1036 = vpack.c.b16 %v1026, %v1025
    %v1037 = vpack.c.b16 %v1028, %v1027
    %v1038 = vpack.c.b16 %v1030, %v1029
    %1047 = vmatprep.subr.bf16.mxu0 0
    %1048 = vmatpush1.bf16.msra.mxu0 %v1038
    %1049 = vmatprep.subr.bf16.mxu0 0
    %1050 = vmatpush1.bf16.msra.mxu0 %v1037
    %1051 = vmatprep.subr.bf16.mxu0 0
    %1052 = vmatpush1.bf16.msra.mxu0 %v1036
    %1053 = vmatprep.subr.bf16.mxu0 0
    %1054 = vmatpush1.bf16.msra.mxu0 %v1035
    %1055 = vmatprep.subr.bf16.mxu0 0
    %1056 = vmatpush1.bf16.msra.mxu0 %v1034
    %1057 = vmatprep.subr.bf16.mxu0 0
    %1058 = vmatpush1.bf16.msra.mxu0 %v1033
    %1059 = vmatprep.subr.bf16.mxu0 0
    %1060 = vmatpush1.bf16.msra.mxu0 %v1032
    %1061 = vmatprep.subr.bf16.mxu0 0
    %1062 = vmatpush1.bf16.msra.mxu0 %v1031
    %1063 = vmatprep.subr.bf16.mxu0 0
    %1064 = vmatpush2.bf16.msra.mxu0 0
    %1065 = vmatprep.subr.bf16.mxu0 0
    %1066 = vmatpush2.bf16.msra.mxu0 0
    %1067 = vmatprep.subr.bf16.mxu0 0
    %1068 = vmatpush2.bf16.msra.mxu0 0
    %1069 = vmatprep.subr.bf16.mxu0 0
    %1070 = vmatpush2.bf16.msra.mxu0 0
    %1071 = vmatprep.subr.bf16.mxu0 0
    %1072 = vmatpush2.bf16.msra.mxu0 0
    %1073 = vmatprep.subr.bf16.mxu0 0
    %1074 = vmatpush2.bf16.msra.mxu0 0
    %1075 = vmatprep.subr.bf16.mxu0 0
    %1076 = vmatpush2.bf16.msra.mxu0 0
    %1077 = vmatprep.subr.bf16.mxu0 0
    %1078 = vmatpush2.bf16.msra.mxu0 0
    %1079 = vmatprep.mubr.bf16.mxu0 0
    %1080 = vmatmul.mubr.bf16.gmra.mxu0 %v960
    %v1081 = vpop.f32.mrf.mxu0
    %v1082 = vadd.f32 %v997, %v1081
    %v1083 = vpop.f32.mrf.mxu0
    %v1084 = vpop.f32.mrf.mxu0
    %v1085 = vadd.f32 %v997, %v1084
    %v1086 = vpop.f32.mrf.mxu0
    %1087 = vmatprep.mubr.bf16.mxu0 0
    %1088 = vmatmul.mubr.bf16.gmra.mxu0 %v961
    %v1089 = vpop.f32.mrf.mxu0
    %v1090 = vadd.f32 %v997, %v1089
    %v1091 = vpop.f32.mrf.mxu0
    %v1092 = vpop.f32.mrf.mxu0
    %v1093 = vadd.f32 %v997, %v1092
    %v1094 = vpop.f32.mrf.mxu0
    %1095 = vmatprep.mubr.bf16.mxu0 0
    %1096 = vmatmul.mubr.bf16.gmra.mxu0 %v962
    %v1097 = vpop.f32.mrf.mxu0
    %v1098 = vadd.f32 %v997, %v1097
    %v1099 = vpop.f32.mrf.mxu0
    %v1100 = vpop.f32.mrf.mxu0
    %v1101 = vadd.f32 %v997, %v1100
    %v1102 = vpop.f32.mrf.mxu0
    %1103 = vmatprep.mubr.bf16.mxu0 0
    %1104 = vmatmul.mubr.bf16.gmra.mxu0 %v963
    %v1105 = vpop.f32.mrf.mxu0
    %v1106 = vadd.f32 %v997, %v1105
    %v1107 = vpop.f32.mrf.mxu0
    %v1108 = vpop.f32.mrf.mxu0
    %v1109 = vadd.f32 %v997, %v1108
    %v1110 = vpop.f32.mrf.mxu0
    %1111 = vmatprep.mubr.bf16.mxu0 0
    %1112 = vmatmul.mubr.bf16.gmra.mxu0 %v964
    %v1113 = vpop.f32.mrf.mxu0
    %v1114 = vadd.f32 %v997, %v1113
    %v1115 = vpop.f32.mrf.mxu0
    %v1116 = vpop.f32.mrf.mxu0
    %v1117 = vadd.f32 %v997, %v1116
    %v1118 = vpop.f32.mrf.mxu0
    %1119 = vmatprep.mubr.bf16.mxu0 0
    %1120 = vmatmul.mubr.bf16.gmra.mxu0 %v965
    %v1121 = vpop.f32.mrf.mxu0
    %v1122 = vadd.f32 %v997, %v1121
    %v1123 = vpop.f32.mrf.mxu0
    %v1124 = vpop.f32.mrf.mxu0
    %v1125 = vadd.f32 %v997, %v1124
    %v1126 = vpop.f32.mrf.mxu0
    %1127 = vmatprep.mubr.bf16.mxu0 0
    %1128 = vmatmul.mubr.bf16.gmra.mxu0 %v966
    %v1129 = vpop.f32.mrf.mxu0
    %v1130 = vadd.f32 %v997, %v1129
    %v1131 = vpop.f32.mrf.mxu0
    %v1132 = vpop.f32.mrf.mxu0
    %v1133 = vadd.f32 %v997, %v1132
    %v1134 = vpop.f32.mrf.mxu0
    %1135 = vmatprep.mubr.bf16.mxu0 0
    %1136 = vmatmul.mubr.bf16.gmra.mxu0 %v967
    %v1137 = vpop.f32.mrf.mxu0
    %v1138 = vadd.f32 %v997, %v1137
    %v1139 = vpop.f32.mrf.mxu0
    %v1140 = vpop.f32.mrf.mxu0
    %v1141 = vadd.f32 %v997, %v1140
    %v1142 = vpop.f32.mrf.mxu0
    %1143 = vmatprep.mubr.bf16.mxu0 0
    %1144 = vmatmul.mubr.bf16.gmra.mxu0 %v968
    %v1145 = vpop.f32.mrf.mxu0
    %v1146 = vadd.f32 %v997, %v1145
    %v1147 = vpop.f32.mrf.mxu0
    %v1148 = vpop.f32.mrf.mxu0
    %v1149 = vadd.f32 %v997, %v1148
    %v1150 = vpop.f32.mrf.mxu0
    %1151 = vmatprep.mubr.bf16.mxu0 0
    %1152 = vmatmul.mubr.bf16.gmra.mxu0 %v969
    %v1153 = vpop.f32.mrf.mxu0
    %v1154 = vadd.f32 %v997, %v1153
    %v1155 = vpop.f32.mrf.mxu0
    %v1156 = vpop.f32.mrf.mxu0
    %v1157 = vadd.f32 %v997, %v1156
    %v1158 = vpop.f32.mrf.mxu0
    %1159 = vmatprep.mubr.bf16.mxu0 0
    %1160 = vmatmul.mubr.bf16.gmra.mxu0 %v970
    %v1161 = vpop.f32.mrf.mxu0
    %v1162 = vadd.f32 %v997, %v1161
    %v1163 = vpop.f32.mrf.mxu0
    %v1164 = vpop.f32.mrf.mxu0
    %v1165 = vadd.f32 %v997, %v1164
    %v1166 = vpop.f32.mrf.mxu0
    %1167 = vmatprep.mubr.bf16.mxu0 0
    %1168 = vmatmul.mubr.bf16.gmra.mxu0 %v971
    %v1169 = vpop.f32.mrf.mxu0
    %v1170 = vadd.f32 %v997, %v1169
    %v1171 = vpop.f32.mrf.mxu0
    %v1172 = vpop.f32.mrf.mxu0
    %v1173 = vadd.f32 %v997, %v1172
    %v1174 = vpop.f32.mrf.mxu0
    %1175 = vmatprep.mubr.bf16.mxu0 0
    %1176 = vmatmul.mubr.bf16.gmra.mxu0 %v972
    %v1177 = vpop.f32.mrf.mxu0
    %v1178 = vadd.f32 %v997, %v1177
    %v1179 = vpop.f32.mrf.mxu0
    %v1180 = vpop.f32.mrf.mxu0
    %v1181 = vadd.f32 %v997, %v1180
    %v1182 = vpop.f32.mrf.mxu0
    %1183 = vmatprep.mubr.bf16.mxu0 0
    %1184 = vmatmul.mubr.bf16.gmra.mxu0 %v973
    %v1185 = vpop.f32.mrf.mxu0
    %v1186 = vadd.f32 %v997, %v1185
    %v1187 = vpop.f32.mrf.mxu0
    %v1188 = vpop.f32.mrf.mxu0
    %v1189 = vadd.f32 %v997, %v1188
    %v1190 = vpop.f32.mrf.mxu0
    %1191 = vmatprep.mubr.bf16.mxu0 0
    %1192 = vmatmul.mubr.bf16.gmra.mxu0 %v974
    %v1193 = vpop.f32.mrf.mxu0
    %v1194 = vadd.f32 %v997, %v1193
    %v1195 = vpop.f32.mrf.mxu0
    %v1196 = vpop.f32.mrf.mxu0
    %v1197 = vadd.f32 %v997, %v1196
    %v1198 = vpop.f32.mrf.mxu0
    %1199 = vmatprep.mubr.bf16.mxu0 0
    %1200 = vmatmul.mubr.bf16.gmra.mxu0 %v975
    %v1201 = vpop.f32.mrf.mxu0
    %v1202 = vadd.f32 %v997, %v1201
    %v1203 = vpop.f32.mrf.mxu0
    %v1204 = vpop.f32.mrf.mxu0
    %v1205 = vadd.f32 %v997, %v1204
    %v1206 = vpop.f32.mrf.mxu0
    %1207 = vdwg.mxu0
    %vm1208 = vcmask 523264
    %v1209 = vsel %vm1208, %v1082, 0.0
    %1210 = vadd.xlane.f32.xlu0 %v1209
    %v1211 = vpop.xlane.xlu0 %1210
    %v1212 = vsel %vm1208, %v1085, 0.0
    %1213 = vadd.xlane.f32.xlu0 %v1212
    %v1214 = vpop.xlane.xlu0 %1213
    %v1215 = vsel %vm1208, %v1090, 0.0
    %1216 = vadd.xlane.f32.xlu0 %v1215
    %v1217 = vpop.xlane.xlu0 %1216
    %v1218 = vsel %vm1208, %v1093, 0.0
    %1219 = vadd.xlane.f32.xlu0 %v1218
    %v1220 = vpop.xlane.xlu0 %1219
    %v1221 = vsel %vm1208, %v1098, 0.0
    %1222 = vadd.xlane.f32.xlu0 %v1221
    %v1223 = vpop.xlane.xlu0 %1222
    %v1224 = vsel %vm1208, %v1101, 0.0
    %1225 = vadd.xlane.f32.xlu0 %v1224
    %v1226 = vpop.xlane.xlu0 %1225
    %v1227 = vsel %vm1208, %v1106, 0.0
    %1228 = vadd.xlane.f32.xlu0 %v1227
    %v1229 = vpop.xlane.xlu0 %1228
    %v1230 = vsel %vm1208, %v1109, 0.0
    %1231 = vadd.xlane.f32.xlu0 %v1230
    %v1232 = vpop.xlane.xlu0 %1231
    %v1233 = vsel %vm1208, %v1114, 0.0
    %1234 = vadd.xlane.f32.xlu0 %v1233
    %v1235 = vpop.xlane.xlu0 %1234
    %v1236 = vsel %vm1208, %v1117, 0.0
    %1237 = vadd.xlane.f32.xlu0 %v1236
    %v1238 = vpop.xlane.xlu0 %1237
    %v1239 = vsel %vm1208, %v1122, 0.0
    %1240 = vadd.xlane.f32.xlu0 %v1239
    %v1241 = vpop.xlane.xlu0 %1240
    %v1242 = vsel %vm1208, %v1125, 0.0
    %1243 = vadd.xlane.f32.xlu0 %v1242
    %v1244 = vpop.xlane.xlu0 %1243
    %v1245 = vsel %vm1208, %v1130, 0.0
    %1246 = vadd.xlane.f32.xlu0 %v1245
    %v1247 = vpop.xlane.xlu0 %1246
    %v1248 = vsel %vm1208, %v1133, 0.0
    %1249 = vadd.xlane.f32.xlu0 %v1248
    %v1250 = vpop.xlane.xlu0 %1249
    %v1251 = vsel %vm1208, %v1138, 0.0
    %1252 = vadd.xlane.f32.xlu0 %v1251
    %v1253 = vpop.xlane.xlu0 %1252
    %v1254 = vsel %vm1208, %v1141, 0.0
    %1255 = vadd.xlane.f32.xlu0 %v1254
    %v1256 = vpop.xlane.xlu0 %1255
    %v1257 = vsel %vm1208, %v1146, 0.0
    %1258 = vadd.xlane.f32.xlu0 %v1257
    %v1259 = vpop.xlane.xlu0 %1258
    %v1260 = vsel %vm1208, %v1149, 0.0
    %1261 = vadd.xlane.f32.xlu0 %v1260
    %v1262 = vpop.xlane.xlu0 %1261
    %v1263 = vsel %vm1208, %v1154, 0.0
    %1264 = vadd.xlane.f32.xlu0 %v1263
    %v1265 = vpop.xlane.xlu0 %1264
    %v1266 = vsel %vm1208, %v1157, 0.0
    %1267 = vadd.xlane.f32.xlu0 %v1266
    %v1268 = vpop.xlane.xlu0 %1267
    %v1269 = vsel %vm1208, %v1162, 0.0
    %1270 = vadd.xlane.f32.xlu0 %v1269
    %v1271 = vpop.xlane.xlu0 %1270
    %v1272 = vsel %vm1208, %v1165, 0.0
    %1273 = vadd.xlane.f32.xlu0 %v1272
    %v1274 = vpop.xlane.xlu0 %1273
    %v1275 = vsel %vm1208, %v1170, 0.0
    %1276 = vadd.xlane.f32.xlu0 %v1275
    %v1277 = vpop.xlane.xlu0 %1276
    %v1278 = vsel %vm1208, %v1173, 0.0
    %1279 = vadd.xlane.f32.xlu0 %v1278
    %v1280 = vpop.xlane.xlu0 %1279
    %v1281 = vsel %vm1208, %v1178, 0.0
    %1282 = vadd.xlane.f32.xlu0 %v1281
    %v1283 = vpop.xlane.xlu0 %1282
    %v1284 = vsel %vm1208, %v1181, 0.0
    %1285 = vadd.xlane.f32.xlu0 %v1284
    %v1286 = vpop.xlane.xlu0 %1285
    %v1287 = vsel %vm1208, %v1186, 0.0
    %1288 = vadd.xlane.f32.xlu0 %v1287
    %v1289 = vpop.xlane.xlu0 %1288
    %v1290 = vsel %vm1208, %v1189, 0.0
    %1291 = vadd.xlane.f32.xlu0 %v1290
    %v1292 = vpop.xlane.xlu0 %1291
    %v1293 = vsel %vm1208, %v1194, 0.0
    %1294 = vadd.xlane.f32.xlu0 %v1293
    %v1295 = vpop.xlane.xlu0 %1294
    %v1296 = vsel %vm1208, %v1197, 0.0
    %1297 = vadd.xlane.f32.xlu0 %v1296
    %v1298 = vpop.xlane.xlu0 %1297
    %v1299 = vsel %vm1208, %v1202, 0.0
    %1300 = vadd.xlane.f32.xlu0 %v1299
    %v1301 = vpop.xlane.xlu0 %1300
    %v1302 = vsel %vm1208, %v1205, 0.0
    %1303 = vadd.xlane.f32.xlu0 %v1302
    %v1304 = vpop.xlane.xlu0 %1303
    %v1305 = vrcp.pop 64.0
    %v1306 = vmul.f32 %v1211, %v1305
    %v1307 = vmul.f32 %v1214, %v1305
    %v1308 = vmul.f32 %v1217, %v1305
    %v1309 = vmul.f32 %v1220, %v1305
    %v1310 = vmul.f32 %v1223, %v1305
    %v1311 = vmul.f32 %v1226, %v1305
    %v1312 = vmul.f32 %v1229, %v1305
    %v1313 = vmul.f32 %v1232, %v1305
    %v1314 = vmul.f32 %v1235, %v1305
    %v1315 = vmul.f32 %v1238, %v1305
    %v1316 = vmul.f32 %v1241, %v1305
    %v1317 = vmul.f32 %v1244, %v1305
    %v1318 = vmul.f32 %v1247, %v1305
    %v1319 = vmul.f32 %v1250, %v1305
    %v1320 = vmul.f32 %v1253, %v1305
    %v1321 = vmul.f32 %v1256, %v1305
    %v1322 = vmul.f32 %v1259, %v1305
    %v1323 = vmul.f32 %v1262, %v1305
    %v1324 = vmul.f32 %v1265, %v1305
    %v1325 = vmul.f32 %v1268, %v1305
    %v1326 = vmul.f32 %v1271, %v1305
    %v1327 = vmul.f32 %v1274, %v1305
    %v1328 = vmul.f32 %v1277, %v1305
    %v1329 = vmul.f32 %v1280, %v1305
    %v1330 = vmul.f32 %v1283, %v1305
    %v1331 = vmul.f32 %v1286, %v1305
    %v1332 = vmul.f32 %v1289, %v1305
    %v1333 = vmul.f32 %v1292, %v1305
    %v1334 = vmul.f32 %v1295, %v1305
    %v1335 = vmul.f32 %v1298, %v1305
    %v1336 = vmul.f32 %v1301, %v1305
    %v1337 = vmul.f32 %v1304, %v1305
    %v1338 = vsub.f32 %v1082, %v1306
    %v1339 = vsub.f32 %v1085, %v1307
    %v1340 = vsub.f32 %v1090, %v1308
    %v1341 = vsub.f32 %v1093, %v1309
    %v1342 = vsub.f32 %v1098, %v1310
    %v1343 = vsub.f32 %v1101, %v1311
    %v1344 = vsub.f32 %v1106, %v1312
    %v1345 = vsub.f32 %v1109, %v1313
    %v1346 = vsub.f32 %v1114, %v1314
    %v1347 = vsub.f32 %v1117, %v1315
    %v1348 = vsub.f32 %v1122, %v1316
    %v1349 = vsub.f32 %v1125, %v1317
    %v1350 = vsub.f32 %v1130, %v1318
    %v1351 = vsub.f32 %v1133, %v1319
    %v1352 = vsub.f32 %v1138, %v1320
    %v1353 = vsub.f32 %v1141, %v1321
    %v1354 = vsub.f32 %v1146, %v1322
    %v1355 = vsub.f32 %v1149, %v1323
    %v1356 = vsub.f32 %v1154, %v1324
    %v1357 = vsub.f32 %v1157, %v1325
    %v1358 = vsub.f32 %v1162, %v1326
    %v1359 = vsub.f32 %v1165, %v1327
    %v1360 = vsub.f32 %v1170, %v1328
    %v1361 = vsub.f32 %v1173, %v1329
    %v1362 = vsub.f32 %v1178, %v1330
    %v1363 = vsub.f32 %v1181, %v1331
    %v1364 = vsub.f32 %v1186, %v1332
    %v1365 = vsub.f32 %v1189, %v1333
    %v1366 = vsub.f32 %v1194, %v1334
    %v1367 = vsub.f32 %v1197, %v1335
    %v1368 = vsub.f32 %v1202, %v1336
    %v1369 = vsub.f32 %v1205, %v1337
    %v1370 = vmul.f32 %v1338, %v1338
    %v1371 = vmul.f32 %v1339, %v1339
    %v1372 = vmul.f32 %v1340, %v1340
    %v1373 = vmul.f32 %v1341, %v1341
    %v1374 = vmul.f32 %v1342, %v1342
    %v1375 = vmul.f32 %v1343, %v1343
    %v1376 = vmul.f32 %v1344, %v1344
    %v1377 = vmul.f32 %v1345, %v1345
    %v1378 = vmul.f32 %v1346, %v1346
    %v1379 = vmul.f32 %v1347, %v1347
    %v1380 = vmul.f32 %v1348, %v1348
    %v1381 = vmul.f32 %v1349, %v1349
    %v1382 = vmul.f32 %v1350, %v1350
    %v1383 = vmul.f32 %v1351, %v1351
    %v1384 = vmul.f32 %v1352, %v1352
    %v1385 = vmul.f32 %v1353, %v1353
    %v1386 = vmul.f32 %v1354, %v1354
    %v1387 = vmul.f32 %v1355, %v1355
    %v1388 = vmul.f32 %v1356, %v1356
    %v1389 = vmul.f32 %v1357, %v1357
    %v1390 = vmul.f32 %v1358, %v1358
    %v1391 = vmul.f32 %v1359, %v1359
    %v1392 = vmul.f32 %v1360, %v1360
    %v1393 = vmul.f32 %v1361, %v1361
    %v1394 = vmul.f32 %v1362, %v1362
    %v1395 = vmul.f32 %v1363, %v1363
    %v1396 = vmul.f32 %v1364, %v1364
    %v1397 = vmul.f32 %v1365, %v1365
    %v1398 = vmul.f32 %v1366, %v1366
    %v1399 = vmul.f32 %v1367, %v1367
    %v1400 = vmul.f32 %v1368, %v1368
    %v1401 = vmul.f32 %v1369, %v1369
    %v1402 = vsel %vm1208, %v1370, 0.0
    %1403 = vadd.xlane.f32.xlu0 %v1402
    %v1404 = vpop.xlane.xlu0 %1403
    %v1405 = vsel %vm1208, %v1371, 0.0
    %1406 = vadd.xlane.f32.xlu0 %v1405
    %v1407 = vpop.xlane.xlu0 %1406
    %v1408 = vsel %vm1208, %v1372, 0.0
    %1409 = vadd.xlane.f32.xlu0 %v1408
    %v1410 = vpop.xlane.xlu0 %1409
    %v1411 = vsel %vm1208, %v1373, 0.0
    %1412 = vadd.xlane.f32.xlu0 %v1411
    %v1413 = vpop.xlane.xlu0 %1412
    %v1414 = vsel %vm1208, %v1374, 0.0
    %1415 = vadd.xlane.f32.xlu0 %v1414
    %v1416 = vpop.xlane.xlu0 %1415
    %v1417 = vsel %vm1208, %v1375, 0.0
    %1418 = vadd.xlane.f32.xlu0 %v1417
    %v1419 = vpop.xlane.xlu0 %1418
    %v1420 = vsel %vm1208, %v1376, 0.0
    %1421 = vadd.xlane.f32.xlu0 %v1420
    %v1422 = vpop.xlane.xlu0 %1421
    %v1423 = vsel %vm1208, %v1377, 0.0
    %1424 = vadd.xlane.f32.xlu0 %v1423
    %v1425 = vpop.xlane.xlu0 %1424
    %v1426 = vsel %vm1208, %v1378, 0.0
    %1427 = vadd.xlane.f32.xlu0 %v1426
    %v1428 = vpop.xlane.xlu0 %1427
    %v1429 = vsel %vm1208, %v1379, 0.0
    %1430 = vadd.xlane.f32.xlu0 %v1429
    %v1431 = vpop.xlane.xlu0 %1430
    %v1432 = vsel %vm1208, %v1380, 0.0
    %1433 = vadd.xlane.f32.xlu0 %v1432
    %v1434 = vpop.xlane.xlu0 %1433
    %v1435 = vsel %vm1208, %v1381, 0.0
    %1436 = vadd.xlane.f32.xlu0 %v1435
    %v1437 = vpop.xlane.xlu0 %1436
    %v1438 = vsel %vm1208, %v1382, 0.0
    %1439 = vadd.xlane.f32.xlu0 %v1438
    %v1440 = vpop.xlane.xlu0 %1439
    %v1441 = vsel %vm1208, %v1383, 0.0
    %1442 = vadd.xlane.f32.xlu0 %v1441
    %v1443 = vpop.xlane.xlu0 %1442
    %v1444 = vsel %vm1208, %v1384, 0.0
    %1445 = vadd.xlane.f32.xlu0 %v1444
    %v1446 = vpop.xlane.xlu0 %1445
    %v1447 = vsel %vm1208, %v1385, 0.0
    %1448 = vadd.xlane.f32.xlu0 %v1447
    %v1449 = vpop.xlane.xlu0 %1448
    %v1450 = vsel %vm1208, %v1386, 0.0
    %1451 = vadd.xlane.f32.xlu0 %v1450
    %v1452 = vpop.xlane.xlu0 %1451
    %v1453 = vsel %vm1208, %v1387, 0.0
    %1454 = vadd.xlane.f32.xlu0 %v1453
    %v1455 = vpop.xlane.xlu0 %1454
    %v1456 = vsel %vm1208, %v1388, 0.0
    %1457 = vadd.xlane.f32.xlu0 %v1456
    %v1458 = vpop.xlane.xlu0 %1457
    %v1459 = vsel %vm1208, %v1389, 0.0
    %1460 = vadd.xlane.f32.xlu0 %v1459
    %v1461 = vpop.xlane.xlu0 %1460
    %v1462 = vsel %vm1208, %v1390, 0.0
    %1463 = vadd.xlane.f32.xlu0 %v1462
    %v1464 = vpop.xlane.xlu0 %1463
    %v1465 = vsel %vm1208, %v1391, 0.0
    %1466 = vadd.xlane.f32.xlu0 %v1465
    %v1467 = vpop.xlane.xlu0 %1466
    %v1468 = vsel %vm1208, %v1392, 0.0
    %1469 = vadd.xlane.f32.xlu0 %v1468
    %v1470 = vpop.xlane.xlu0 %1469
    %v1471 = vsel %vm1208, %v1393, 0.0
    %1472 = vadd.xlane.f32.xlu0 %v1471
    %v1473 = vpop.xlane.xlu0 %1472
    %v1474 = vsel %vm1208, %v1394, 0.0
    %1475 = vadd.xlane.f32.xlu0 %v1474
    %v1476 = vpop.xlane.xlu0 %1475
    %v1477 = vsel %vm1208, %v1395, 0.0
    %1478 = vadd.xlane.f32.xlu0 %v1477
    %v1479 = vpop.xlane.xlu0 %1478
    %v1480 = vsel %vm1208, %v1396, 0.0
    %1481 = vadd.xlane.f32.xlu0 %v1480
    %v1482 = vpop.xlane.xlu0 %1481
    %v1483 = vsel %vm1208, %v1397, 0.0
    %1484 = vadd.xlane.f32.xlu0 %v1483
    %v1485 = vpop.xlane.xlu0 %1484
    %v1486 = vsel %vm1208, %v1398, 0.0
    %1487 = vadd.xlane.f32.xlu0 %v1486
    %v1488 = vpop.xlane.xlu0 %1487
    %v1489 = vsel %vm1208, %v1399, 0.0
    %1490 = vadd.xlane.f32.xlu0 %v1489
    %v1491 = vpop.xlane.xlu0 %1490
    %v1492 = vsel %vm1208, %v1400, 0.0
    %1493 = vadd.xlane.f32.xlu0 %v1492
    %v1494 = vpop.xlane.xlu0 %1493
    %v1495 = vsel %vm1208, %v1401, 0.0
    %1496 = vadd.xlane.f32.xlu0 %v1495
    %v1497 = vpop.xlane.xlu0 %1496
    %v1498 = vmul.f32 %v1404, %v1305
    %v1499 = vmul.f32 %v1407, %v1305
    %v1500 = vmul.f32 %v1410, %v1305
    %v1501 = vmul.f32 %v1413, %v1305
    %v1502 = vmul.f32 %v1416, %v1305
    %v1503 = vmul.f32 %v1419, %v1305
    %v1504 = vmul.f32 %v1422, %v1305
    %v1505 = vmul.f32 %v1425, %v1305
    %v1506 = vmul.f32 %v1428, %v1305
    %v1507 = vmul.f32 %v1431, %v1305
    %v1508 = vmul.f32 %v1434, %v1305
    %v1509 = vmul.f32 %v1437, %v1305
    %v1510 = vmul.f32 %v1440, %v1305
    %v1511 = vmul.f32 %v1443, %v1305
    %v1512 = vmul.f32 %v1446, %v1305
    %v1513 = vmul.f32 %v1449, %v1305
    %v1514 = vmul.f32 %v1452, %v1305
    %v1515 = vmul.f32 %v1455, %v1305
    %v1516 = vmul.f32 %v1458, %v1305
    %v1517 = vmul.f32 %v1461, %v1305
    %v1518 = vmul.f32 %v1464, %v1305
    %v1519 = vmul.f32 %v1467, %v1305
    %v1520 = vmul.f32 %v1470, %v1305
    %v1521 = vmul.f32 %v1473, %v1305
    %v1522 = vmul.f32 %v1476, %v1305
    %v1523 = vmul.f32 %v1479, %v1305
    %v1524 = vmul.f32 %v1482, %v1305
    %v1525 = vmul.f32 %v1485, %v1305
    %v1526 = vmul.f32 %v1488, %v1305
    %v1527 = vmul.f32 %v1491, %v1305
    %v1528 = vmul.f32 %v1494, %v1305
    %v1529 = vmul.f32 %v1497, %v1305
    %v1530 = vadd.f32 %v1498, 1e-05
    %v1531 = vadd.f32 %v1499, 1e-05
    %v1532 = vadd.f32 %v1500, 1e-05
    %v1533 = vadd.f32 %v1501, 1e-05
    %v1534 = vadd.f32 %v1502, 1e-05
    %v1535 = vadd.f32 %v1503, 1e-05
    %v1536 = vadd.f32 %v1504, 1e-05
    %v1537 = vadd.f32 %v1505, 1e-05
    %v1538 = vadd.f32 %v1506, 1e-05
    %v1539 = vadd.f32 %v1507, 1e-05
    %v1540 = vadd.f32 %v1508, 1e-05
    %v1541 = vadd.f32 %v1509, 1e-05
    %v1542 = vadd.f32 %v1510, 1e-05
    %v1543 = vadd.f32 %v1511, 1e-05
    %v1544 = vadd.f32 %v1512, 1e-05
    %v1545 = vadd.f32 %v1513, 1e-05
    %v1546 = vadd.f32 %v1514, 1e-05
    %v1547 = vadd.f32 %v1515, 1e-05
    %v1548 = vadd.f32 %v1516, 1e-05
    %v1549 = vadd.f32 %v1517, 1e-05
    %v1550 = vadd.f32 %v1518, 1e-05
    %v1551 = vadd.f32 %v1519, 1e-05
    %v1552 = vadd.f32 %v1520, 1e-05
    %v1553 = vadd.f32 %v1521, 1e-05
    %v1554 = vadd.f32 %v1522, 1e-05
    %v1555 = vadd.f32 %v1523, 1e-05
    %v1556 = vadd.f32 %v1524, 1e-05
    %v1557 = vadd.f32 %v1525, 1e-05
    %v1558 = vadd.f32 %v1526, 1e-05
    %v1559 = vadd.f32 %v1527, 1e-05
    %v1560 = vadd.f32 %v1528, 1e-05
    %v1561 = vadd.f32 %v1529, 1e-05
    %v1562 = vrsqrt.pop %v1530
    %v1563 = vrsqrt.pop %v1531
    %v1564 = vrsqrt.pop %v1532
    %v1565 = vrsqrt.pop %v1533
    %v1566 = vrsqrt.pop %v1534
    %v1567 = vrsqrt.pop %v1535
    %v1568 = vrsqrt.pop %v1536
    %v1569 = vrsqrt.pop %v1537
    %v1570 = vrsqrt.pop %v1538
    %v1571 = vrsqrt.pop %v1539
    %v1572 = vrsqrt.pop %v1540
    %v1573 = vrsqrt.pop %v1541
    %v1574 = vrsqrt.pop %v1542
    %v1575 = vrsqrt.pop %v1543
    %v1576 = vrsqrt.pop %v1544
    %v1577 = vrsqrt.pop %v1545
    %v1578 = vrsqrt.pop %v1546
    %v1579 = vrsqrt.pop %v1547
    %v1580 = vrsqrt.pop %v1548
    %v1581 = vrsqrt.pop %v1549
    %v1582 = vrsqrt.pop %v1550
    %v1583 = vrsqrt.pop %v1551
    %v1584 = vrsqrt.pop %v1552
    %v1585 = vrsqrt.pop %v1553
    %v1586 = vrsqrt.pop %v1554
    %v1587 = vrsqrt.pop %v1555
    %v1588 = vrsqrt.pop %v1556
    %v1589 = vrsqrt.pop %v1557
    %v1590 = vrsqrt.pop %v1558
    %v1591 = vrsqrt.pop %v1559
    %v1592 = vrsqrt.pop %v1560
    %v1593 = vrsqrt.pop %v1561
    %v1594 = vmul.f32 %v1338, %v1562
    %v1595 = vmul.f32 %v1339, %v1563
    %v1596 = vmul.f32 %v1340, %v1564
    %v1597 = vmul.f32 %v1341, %v1565
    %v1598 = vmul.f32 %v1342, %v1566
    %v1599 = vmul.f32 %v1343, %v1567
    %v1600 = vmul.f32 %v1344, %v1568
    %v1601 = vmul.f32 %v1345, %v1569
    %v1602 = vmul.f32 %v1346, %v1570
    %v1603 = vmul.f32 %v1347, %v1571
    %v1604 = vmul.f32 %v1348, %v1572
    %v1605 = vmul.f32 %v1349, %v1573
    %v1606 = vmul.f32 %v1350, %v1574
    %v1607 = vmul.f32 %v1351, %v1575
    %v1608 = vmul.f32 %v1352, %v1576
    %v1609 = vmul.f32 %v1353, %v1577
    %v1610 = vmul.f32 %v1354, %v1578
    %v1611 = vmul.f32 %v1355, %v1579
    %v1612 = vmul.f32 %v1356, %v1580
    %v1613 = vmul.f32 %v1357, %v1581
    %v1614 = vmul.f32 %v1358, %v1582
    %v1615 = vmul.f32 %v1359, %v1583
    %v1616 = vmul.f32 %v1360, %v1584
    %v1617 = vmul.f32 %v1361, %v1585
    %v1618 = vmul.f32 %v1362, %v1586
    %v1619 = vmul.f32 %v1363, %v1587
    %v1620 = vmul.f32 %v1364, %v1588
    %v1621 = vmul.f32 %v1365, %v1589
    %v1622 = vmul.f32 %v1366, %v1590
    %v1623 = vmul.f32 %v1367, %v1591
    %v1624 = vmul.f32 %v1368, %v1592
    %v1625 = vmul.f32 %v1369, %v1593
    %v1626 = vld [vmem:[%s7] sm:$0x1]
    %v1628 = vlaneseq
    %v1629 = vshrl.u32 %v1628, 7
    %v1630 = vsub.s32 0, %v1629
    %v1631 = vrot.slane %v1626, %v1630
    %v1633 = vmul.f32 %v1594, %v1631
    %v1634 = vmul.f32 %v1595, %v1631
    %v1635 = vmul.f32 %v1596, %v1631
    %v1636 = vmul.f32 %v1597, %v1631
    %v1637 = vmul.f32 %v1598, %v1631
    %v1638 = vmul.f32 %v1599, %v1631
    %v1639 = vmul.f32 %v1600, %v1631
    %v1640 = vmul.f32 %v1601, %v1631
    %v1641 = vmul.f32 %v1602, %v1631
    %v1642 = vmul.f32 %v1603, %v1631
    %v1643 = vmul.f32 %v1604, %v1631
    %v1644 = vmul.f32 %v1605, %v1631
    %v1645 = vmul.f32 %v1606, %v1631
    %v1646 = vmul.f32 %v1607, %v1631
    %v1647 = vmul.f32 %v1608, %v1631
    %v1648 = vmul.f32 %v1609, %v1631
    %v1649 = vmul.f32 %v1610, %v1631
    %v1650 = vmul.f32 %v1611, %v1631
    %v1651 = vmul.f32 %v1612, %v1631
    %v1652 = vmul.f32 %v1613, %v1631
    %v1653 = vmul.f32 %v1614, %v1631
    %v1654 = vmul.f32 %v1615, %v1631
    %v1655 = vmul.f32 %v1616, %v1631
    %v1656 = vmul.f32 %v1617, %v1631
    %v1657 = vmul.f32 %v1618, %v1631
    %v1658 = vmul.f32 %v1619, %v1631
    %v1659 = vmul.f32 %v1620, %v1631
    %v1660 = vmul.f32 %v1621, %v1631
    %v1661 = vmul.f32 %v1622, %v1631
    %v1662 = vmul.f32 %v1623, %v1631
    %v1663 = vmul.f32 %v1624, %v1631
    %v1664 = vmul.f32 %v1625, %v1631
    %v1665 = vld [vmem:[%s8] sm:$0x1]
    %v1667 = vlaneseq
    %v1668 = vshrl.u32 %v1667, 7
    %v1669 = vsub.s32 0, %v1668
    %v1670 = vrot.slane %v1665, %v1669
    %v1672 = vadd.f32 %v1633, %v1670
    %v1673 = vadd.f32 %v1634, %v1670
    %v1674 = vadd.f32 %v1635, %v1670
    %v1675 = vadd.f32 %v1636, %v1670
    %v1676 = vadd.f32 %v1637, %v1670
    %v1677 = vadd.f32 %v1638, %v1670
    %v1678 = vadd.f32 %v1639, %v1670
    %v1679 = vadd.f32 %v1640, %v1670
    %v1680 = vadd.f32 %v1641, %v1670
    %v1681 = vadd.f32 %v1642, %v1670
    %v1682 = vadd.f32 %v1643, %v1670
    %v1683 = vadd.f32 %v1644, %v1670
    %v1684 = vadd.f32 %v1645, %v1670
    %v1685 = vadd.f32 %v1646, %v1670
    %v1686 = vadd.f32 %v1647, %v1670
    %v1687 = vadd.f32 %v1648, %v1670
    %v1688 = vadd.f32 %v1649, %v1670
    %v1689 = vadd.f32 %v1650, %v1670
    %v1690 = vadd.f32 %v1651, %v1670
    %v1691 = vadd.f32 %v1652, %v1670
    %v1692 = vadd.f32 %v1653, %v1670
    %v1693 = vadd.f32 %v1654, %v1670
    %v1694 = vadd.f32 %v1655, %v1670
    %v1695 = vadd.f32 %v1656, %v1670
    %v1696 = vadd.f32 %v1657, %v1670
    %v1697 = vadd.f32 %v1658, %v1670
    %v1698 = vadd.f32 %v1659, %v1670
    %v1699 = vadd.f32 %v1660, %v1670
    %v1700 = vadd.f32 %v1661, %v1670
    %v1701 = vadd.f32 %v1662, %v1670
    %v1702 = vadd.f32 %v1663, %v1670
    %v1703 = vadd.f32 %v1664, %v1670
    %v1704 = vmax.f32 %v1672, 0.0
    %v1705 = vmax.f32 %v1673, 0.0
    %v1706 = vmax.f32 %v1674, 0.0
    %v1707 = vmax.f32 %v1675, 0.0
    %v1708 = vmax.f32 %v1676, 0.0
    %v1709 = vmax.f32 %v1677, 0.0
    %v1710 = vmax.f32 %v1678, 0.0
    %v1711 = vmax.f32 %v1679, 0.0
    %v1712 = vmax.f32 %v1680, 0.0
    %v1713 = vmax.f32 %v1681, 0.0
    %v1714 = vmax.f32 %v1682, 0.0
    %v1715 = vmax.f32 %v1683, 0.0
    %v1716 = vmax.f32 %v1684, 0.0
    %v1717 = vmax.f32 %v1685, 0.0
    %v1718 = vmax.f32 %v1686, 0.0
    %v1719 = vmax.f32 %v1687, 0.0
    %v1720 = vmax.f32 %v1688, 0.0
    %v1721 = vmax.f32 %v1689, 0.0
    %v1722 = vmax.f32 %v1690, 0.0
    %v1723 = vmax.f32 %v1691, 0.0
    %v1724 = vmax.f32 %v1692, 0.0
    %v1725 = vmax.f32 %v1693, 0.0
    %v1726 = vmax.f32 %v1694, 0.0
    %v1727 = vmax.f32 %v1695, 0.0
    %v1728 = vmax.f32 %v1696, 0.0
    %v1729 = vmax.f32 %v1697, 0.0
    %v1730 = vmax.f32 %v1698, 0.0
    %v1731 = vmax.f32 %v1699, 0.0
    %v1732 = vmax.f32 %v1700, 0.0
    %v1733 = vmax.f32 %v1701, 0.0
    %v1734 = vmax.f32 %v1702, 0.0
    %v1735 = vmax.f32 %v1703, 0.0
    %v1736 = vpack.c.bf16 %v1705, %v1704
    %v1737 = vpack.c.bf16 %v1707, %v1706
    %v1738 = vpack.c.bf16 %v1709, %v1708
    %v1739 = vpack.c.bf16 %v1711, %v1710
    %v1740 = vpack.c.bf16 %v1713, %v1712
    %v1741 = vpack.c.bf16 %v1715, %v1714
    %v1742 = vpack.c.bf16 %v1717, %v1716
    %v1743 = vpack.c.bf16 %v1719, %v1718
    %v1744 = vpack.c.bf16 %v1721, %v1720
    %v1745 = vpack.c.bf16 %v1723, %v1722
    %v1746 = vpack.c.bf16 %v1725, %v1724
    %v1747 = vpack.c.bf16 %v1727, %v1726
    %v1748 = vpack.c.bf16 %v1729, %v1728
    %v1749 = vpack.c.bf16 %v1731, %v1730
    %v1750 = vpack.c.bf16 %v1733, %v1732
    %v1751 = vpack.c.bf16 %v1735, %v1734
    %v1752 = vld [vmem:[%s9] sm:$0xf]
    %v1753 = vld [vmem:[%s9 + $0x4] sm:$0xf]
    %v1754 = vld [vmem:[%s9 + $0x8] sm:$0xf]
    %v1755 = vld [vmem:[%s9 + $0xc] sm:$0xf]
    %v1756 = vld [vmem:[%s9 + $0x10] sm:$0xf]
    %v1757 = vld [vmem:[%s9 + $0x14] sm:$0xf]
    %v1758 = vld [vmem:[%s9 + $0x18] sm:$0xf]
    %v1759 = vld [vmem:[%s9 + $0x1c] sm:$0xf]
    %v1760 = vld [vmem:[%s10] sm:$0x1]
    %v1762 = vlaneseq
    %v1763 = vshrl.u32 %v1762, 7
    %v1764 = vsub.s32 0, %v1763
    %v1765 = vrot.slane %v1760, %v1764
    %v1775 = vunpack.c.l.b16 %v1752
    %v1776 = vunpack.c.l.b16 %v1753
    %v1777 = vunpack.c.l.b16 %v1754
    %v1778 = vunpack.c.l.b16 %v1755
    %v1779 = vunpack.c.l.b16 %v1756
    %v1780 = vunpack.c.l.b16 %v1757
    %v1781 = vunpack.c.l.b16 %v1758
    %v1782 = vunpack.c.l.b16 %v1759
    %v1783 = vpack.c.b16 %v1776, %v1775
    %v1784 = vpack.c.b16 %v1778, %v1777
    %v1785 = vpack.c.b16 %v1780, %v1779
    %v1786 = vpack.c.b16 %v1782, %v1781
    %v1792 = vsel %vm1208, %v1736, 0
    %v1795 = vsel %vm1208, %v1737, 0
    %v1798 = vsel %vm1208, %v1738, 0
    %v1801 = vsel %vm1208, %v1739, 0
    %v1804 = vsel %vm1208, %v1740, 0
    %v1807 = vsel %vm1208, %v1741, 0
    %v1810 = vsel %vm1208, %v1742, 0
    %v1813 = vsel %vm1208, %v1743, 0
    %v1816 = vsel %vm1208, %v1744, 0
    %v1819 = vsel %vm1208, %v1745, 0
    %v1822 = vsel %vm1208, %v1746, 0
    %v1825 = vsel %vm1208, %v1747, 0
    %v1828 = vsel %vm1208, %v1748, 0
    %v1831 = vsel %vm1208, %v1749, 0
    %v1834 = vsel %vm1208, %v1750, 0
    %v1837 = vsel %vm1208, %v1751, 0
    %1839 = vmatprep.subr.bf16.mxu0 0
    %1840 = vmatpush1.bf16.msra.mxu0 0
    %1841 = vmatprep.subr.bf16.mxu0 0
    %1842 = vmatpush1.bf16.msra.mxu0 0
    %1843 = vmatprep.subr.bf16.mxu0 0
    %1844 = vmatpush1.bf16.msra.mxu0 0
    %1845 = vmatprep.subr.bf16.mxu0 0
    %1846 = vmatpush1.bf16.msra.mxu0 0
    %1847 = vmatprep.subr.bf16.mxu0 0
    %1848 = vmatpush1.bf16.msra.mxu0 %v1786
    %1849 = vmatprep.subr.bf16.mxu0 0
    %1850 = vmatpush1.bf16.msra.mxu0 %v1785
    %1851 = vmatprep.subr.bf16.mxu0 0
    %1852 = vmatpush1.bf16.msra.mxu0 %v1784
    %1853 = vmatprep.subr.bf16.mxu0 0
    %1854 = vmatpush1.bf16.msra.mxu0 %v1783
    %1855 = vmatprep.subr.bf16.mxu0 0
    %1856 = vmatpush2.bf16.msra.mxu0 0
    %1857 = vmatprep.subr.bf16.mxu0 0
    %1858 = vmatpush2.bf16.msra.mxu0 0
    %1859 = vmatprep.subr.bf16.mxu0 0
    %1860 = vmatpush2.bf16.msra.mxu0 0
    %1861 = vmatprep.subr.bf16.mxu0 0
    %1862 = vmatpush2.bf16.msra.mxu0 0
    %1863 = vmatprep.subr.bf16.mxu0 0
    %1864 = vmatpush2.bf16.msra.mxu0 0
    %1865 = vmatprep.subr.bf16.mxu0 0
    %1866 = vmatpush2.bf16.msra.mxu0 0
    %1867 = vmatprep.subr.bf16.mxu0 0
    %1868 = vmatpush2.bf16.msra.mxu0 0
    %1869 = vmatprep.subr.bf16.mxu0 0
    %1870 = vmatpush2.bf16.msra.mxu0 0
    %1871 = vmatprep.mubr.bf16.mxu0 0
    %1872 = vmatmul.mubr.bf16.gmra.mxu0 %v1792
    %v1873 = vpop.f32.mrf.mxu0
    %v1874 = vadd.f32 %v1765, %v1873
    %v1875 = vpop.f32.mrf.mxu0
    %v1876 = vpop.f32.mrf.mxu0
    %v1877 = vadd.f32 %v1765, %v1876
    %v1878 = vpop.f32.mrf.mxu0
    %1879 = vmatprep.mubr.bf16.mxu0 0
    %1880 = vmatmul.mubr.bf16.gmra.mxu0 %v1795
    %v1881 = vpop.f32.mrf.mxu0
    %v1882 = vadd.f32 %v1765, %v1881
    %v1883 = vpop.f32.mrf.mxu0
    %v1884 = vpop.f32.mrf.mxu0
    %v1885 = vadd.f32 %v1765, %v1884
    %v1886 = vpop.f32.mrf.mxu0
    %1887 = vmatprep.mubr.bf16.mxu0 0
    %1888 = vmatmul.mubr.bf16.gmra.mxu0 %v1798
    %v1889 = vpop.f32.mrf.mxu0
    %v1890 = vadd.f32 %v1765, %v1889
    %v1891 = vpop.f32.mrf.mxu0
    %v1892 = vpop.f32.mrf.mxu0
    %v1893 = vadd.f32 %v1765, %v1892
    %v1894 = vpop.f32.mrf.mxu0
    %1895 = vmatprep.mubr.bf16.mxu0 0
    %1896 = vmatmul.mubr.bf16.gmra.mxu0 %v1801
    %v1897 = vpop.f32.mrf.mxu0
    %v1898 = vadd.f32 %v1765, %v1897
    %v1899 = vpop.f32.mrf.mxu0
    %v1900 = vpop.f32.mrf.mxu0
    %v1901 = vadd.f32 %v1765, %v1900
    %v1902 = vpop.f32.mrf.mxu0
    %1903 = vmatprep.mubr.bf16.mxu0 0
    %1904 = vmatmul.mubr.bf16.gmra.mxu0 %v1804
    %v1905 = vpop.f32.mrf.mxu0
    %v1906 = vadd.f32 %v1765, %v1905
    %v1907 = vpop.f32.mrf.mxu0
    %v1908 = vpop.f32.mrf.mxu0
    %v1909 = vadd.f32 %v1765, %v1908
    %v1910 = vpop.f32.mrf.mxu0
    %1911 = vmatprep.mubr.bf16.mxu0 0
    %1912 = vmatmul.mubr.bf16.gmra.mxu0 %v1807
    %v1913 = vpop.f32.mrf.mxu0
    %v1914 = vadd.f32 %v1765, %v1913
    %v1915 = vpop.f32.mrf.mxu0
    %v1916 = vpop.f32.mrf.mxu0
    %v1917 = vadd.f32 %v1765, %v1916
    %v1918 = vpop.f32.mrf.mxu0
    %1919 = vmatprep.mubr.bf16.mxu0 0
    %1920 = vmatmul.mubr.bf16.gmra.mxu0 %v1810
    %v1921 = vpop.f32.mrf.mxu0
    %v1922 = vadd.f32 %v1765, %v1921
    %v1923 = vpop.f32.mrf.mxu0
    %v1924 = vpop.f32.mrf.mxu0
    %v1925 = vadd.f32 %v1765, %v1924
    %v1926 = vpop.f32.mrf.mxu0
    %1927 = vmatprep.mubr.bf16.mxu0 0
    %1928 = vmatmul.mubr.bf16.gmra.mxu0 %v1813
    %v1929 = vpop.f32.mrf.mxu0
    %v1930 = vadd.f32 %v1765, %v1929
    %v1931 = vpop.f32.mrf.mxu0
    %v1932 = vpop.f32.mrf.mxu0
    %v1933 = vadd.f32 %v1765, %v1932
    %v1934 = vpop.f32.mrf.mxu0
    %1935 = vmatprep.mubr.bf16.mxu0 0
    %1936 = vmatmul.mubr.bf16.gmra.mxu0 %v1816
    %v1937 = vpop.f32.mrf.mxu0
    %v1938 = vadd.f32 %v1765, %v1937
    %v1939 = vpop.f32.mrf.mxu0
    %v1940 = vpop.f32.mrf.mxu0
    %v1941 = vadd.f32 %v1765, %v1940
    %v1942 = vpop.f32.mrf.mxu0
    %1943 = vmatprep.mubr.bf16.mxu0 0
    %1944 = vmatmul.mubr.bf16.gmra.mxu0 %v1819
    %v1945 = vpop.f32.mrf.mxu0
    %v1946 = vadd.f32 %v1765, %v1945
    %v1947 = vpop.f32.mrf.mxu0
    %v1948 = vpop.f32.mrf.mxu0
    %v1949 = vadd.f32 %v1765, %v1948
    %v1950 = vpop.f32.mrf.mxu0
    %1951 = vmatprep.mubr.bf16.mxu0 0
    %1952 = vmatmul.mubr.bf16.gmra.mxu0 %v1822
    %v1953 = vpop.f32.mrf.mxu0
    %v1954 = vadd.f32 %v1765, %v1953
    %v1955 = vpop.f32.mrf.mxu0
    %v1956 = vpop.f32.mrf.mxu0
    %v1957 = vadd.f32 %v1765, %v1956
    %v1958 = vpop.f32.mrf.mxu0
    %1959 = vmatprep.mubr.bf16.mxu0 0
    %1960 = vmatmul.mubr.bf16.gmra.mxu0 %v1825
    %v1961 = vpop.f32.mrf.mxu0
    %v1962 = vadd.f32 %v1765, %v1961
    %v1963 = vpop.f32.mrf.mxu0
    %v1964 = vpop.f32.mrf.mxu0
    %v1965 = vadd.f32 %v1765, %v1964
    %v1966 = vpop.f32.mrf.mxu0
    %1967 = vmatprep.mubr.bf16.mxu0 0
    %1968 = vmatmul.mubr.bf16.gmra.mxu0 %v1828
    %v1969 = vpop.f32.mrf.mxu0
    %v1970 = vadd.f32 %v1765, %v1969
    %v1971 = vpop.f32.mrf.mxu0
    %v1972 = vpop.f32.mrf.mxu0
    %v1973 = vadd.f32 %v1765, %v1972
    %v1974 = vpop.f32.mrf.mxu0
    %1975 = vmatprep.mubr.bf16.mxu0 0
    %1976 = vmatmul.mubr.bf16.gmra.mxu0 %v1831
    %v1977 = vpop.f32.mrf.mxu0
    %v1978 = vadd.f32 %v1765, %v1977
    %v1979 = vpop.f32.mrf.mxu0
    %v1980 = vpop.f32.mrf.mxu0
    %v1981 = vadd.f32 %v1765, %v1980
    %v1982 = vpop.f32.mrf.mxu0
    %1983 = vmatprep.mubr.bf16.mxu0 0
    %1984 = vmatmul.mubr.bf16.gmra.mxu0 %v1834
    %v1985 = vpop.f32.mrf.mxu0
    %v1986 = vadd.f32 %v1765, %v1985
    %v1987 = vpop.f32.mrf.mxu0
    %v1988 = vpop.f32.mrf.mxu0
    %v1989 = vadd.f32 %v1765, %v1988
    %v1990 = vpop.f32.mrf.mxu0
    %1991 = vmatprep.mubr.bf16.mxu0 0
    %1992 = vmatmul.mubr.bf16.gmra.mxu0 %v1837
    %v1993 = vpop.f32.mrf.mxu0
    %v1994 = vadd.f32 %v1765, %v1993
    %v1995 = vpop.f32.mrf.mxu0
    %v1996 = vpop.f32.mrf.mxu0
    %v1997 = vadd.f32 %v1765, %v1996
    %v1998 = vpop.f32.mrf.mxu0
    %1999 = vdwg.mxu0
    %2000 = vst [vmem:[#allocation2] sm:$0xff] %v1874
    %2001 = vst [vmem:[#allocation2 + $0x8] sm:$0xff] %v1877
    %2002 = vst [vmem:[#allocation2 + $0x10] sm:$0xff] %v1882
    %2003 = vst [vmem:[#allocation2 + $0x18] sm:$0xff] %v1885
    %2004 = vst [vmem:[#allocation2 + $0x20] sm:$0xff] %v1890
    %2005 = vst [vmem:[#allocation2 + $0x28] sm:$0xff] %v1893
    %2006 = vst [vmem:[#allocation2 + $0x30] sm:$0xff] %v1898
    %2007 = vst [vmem:[#allocation2 + $0x38] sm:$0xff] %v1901
    %2008 = vst [vmem:[#allocation2 + $0x40] sm:$0xff] %v1906
    %2009 = vst [vmem:[#allocation2 + $0x48] sm:$0xff] %v1909
    %2010 = vst [vmem:[#allocation2 + $0x50] sm:$0xff] %v1914
    %2011 = vst [vmem:[#allocation2 + $0x58] sm:$0xff] %v1917
    %2012 = vst [vmem:[#allocation2 + $0x60] sm:$0xff] %v1922
    %2013 = vst [vmem:[#allocation2 + $0x68] sm:$0xff] %v1925
    %2014 = vst [vmem:[#allocation2 + $0x70] sm:$0xff] %v1930
    %2015 = vst [vmem:[#allocation2 + $0x78] sm:$0xff] %v1933
    %2016 = vst [vmem:[#allocation2 + $0x80] sm:$0xff] %v1938
    %2017 = vst [vmem:[#allocation2 + $0x88] sm:$0xff] %v1941
    %2018 = vst [vmem:[#allocation2 + $0x90] sm:$0xff] %v1946
    %2019 = vst [vmem:[#allocation2 + $0x98] sm:$0xff] %v1949
    %2020 = vst [vmem:[#allocation2 + $0xa0] sm:$0xff] %v1954
    %2021 = vst [vmem:[#allocation2 + $0xa8] sm:$0xff] %v1957
    %2022 = vst [vmem:[#allocation2 + $0xb0] sm:$0xff] %v1962
    %2023 = vst [vmem:[#allocation2 + $0xb8] sm:$0xff] %v1965
    %2024 = vst [vmem:[#allocation2 + $0xc0] sm:$0xff] %v1970
    %2025 = vst [vmem:[#allocation2 + $0xc8] sm:$0xff] %v1973
    %2026 = vst [vmem:[#allocation2 + $0xd0] sm:$0xff] %v1978
    %2027 = vst [vmem:[#allocation2 + $0xd8] sm:$0xff] %v1981
    %2028 = vst [vmem:[#allocation2 + $0xe0] sm:$0xff] %v1986
    %2029 = vst [vmem:[#allocation2 + $0xe8] sm:$0xff] %v1989
    %2030 = vst [vmem:[#allocation2 + $0xf0] sm:$0xff] %v1994
    %2031 = vst [vmem:[#allocation2 + $0xf8] sm:$0xff] %v1997
    // Predicated region
    $region46: #{tpu_custom_call.1} parent=1 // pred_check
      _
    $region47: #{tpu_custom_call.1} parent=1 // pred_check_branch
      %2033 = sbr.rel (0) target = $region49
    $region48: #{tpu_custom_call.1} parent=1 // pred_region
      %s2035 = ssub.s32 4096, 4096
      %2036 = vsyncadd [#allocation3], %s2035
      %s2037 = sshll.u32 [#allocation2], 4
      %s2038 = int_to_ptr.vmem [resolvable:$true] %s2037
      %2043 = dma.vmem_to_hbm [thread:$0]  %s2038, 4096, %s11, [#allocation3], 128, 128, 8
    $region49: #{tpu_custom_call.1} parent=1 // pred_fallthru
      _
    // Predicated region
    $region50: #{tpu_custom_call.1} parent=1 // pred_check
      _
    $region51: #{tpu_custom_call.1} parent=1 // pred_check_branch
      %2045 = sbr.rel (0) target = $region53
    $region52: #{tpu_custom_call.1} parent=1 // pred_region
      %2046 = dma.done [#allocation3], 4096
    $region53: #{tpu_custom_call.1} parent=1 // pred_fallthru
      _
    %2047 = vsyncpa [#allocation3], 1

</llo_original>
